<compile_context>
chip_gen: v7x
topology: tpu7x:2x2x1
jax: 0.10.0
libtpu: 0.0.40
codegen_flags: <defaults>
</compile_context>

<pallas_src>
import math

import jax
import jax.numpy as jnp
from jax.experimental import pallas as pl
from jax.experimental.pallas import tpu as pltpu


def _make_sapa_kernel(cy, cx, e, eps=1e-5):
    """cy: y channels, cx: x channels (dim_x // 2), e: embedding dim."""

    def sapa_kernel(y_ref, xa_ref, mask_ref, w_ref, out_ref):
        y = y_ref[0]                 # (R, Cy) f32
        xa = xa_ref[0]               # (S, Cx + 1) f32; last column is all ones
        x = xa[:, :cx]               # raw x channels (S, Cx)

        # Packed, pre-folded parameters (built once at load time):
        #   rows [0, Cy)        : Wq^T * gamma_y * inv_scale
        #   rows [Cy, Cy+Cx)    : Wk^T * gamma_x
        #   row  Cy+Cx          : (beta_y @ Wq^T + bq) * inv_scale
        #   row  Cy+Cx+1        : beta_x @ Wk^T + bk
        w = w_ref[...]
        wq = w[0:cy, :]
        wk = w[cy:cy + cx, :]
        bq = w[cy + cx:cy + cx + 1, :]
        bk = w[cy + cx + 1:cy + cx + 2, :]

        def norm(v):                 # LayerNorm without affine (folded into W)
            mu = jnp.mean(v, axis=-1, keepdims=True)
            c = v - mu
            var = jnp.mean(c * c, axis=-1, keepdims=True)
            return c * jax.lax.rsqrt(var + eps)

        q = jnp.dot(norm(y), wq, preferred_element_type=jnp.float32) + bq   # (R, E)
        k = jnp.dot(norm(x), wk, preferred_element_type=jnp.float32) + bk   # (S, E)

        # One big scores matmul for the whole step: (R, E) x (S, E)^T.
        scores = jax.lax.dot_general(
            q, k, (((1,), (1,)), ((), ())),
            preferred_element_type=jnp.float32)                             # (R, S)

        # Precomputed block-diagonal additive mask (0 / -1e30): queries of one
        # image row only attend to keys of the same image row (what torch's
        # (B, H) batched matmul broadcasting does in the reference).
        scores = scores + mask_ref[...]

        # Unnormalized softmax numerator; masked entries underflow to exact 0.
        p = jnp.exp(scores - jnp.max(scores, axis=-1, keepdims=True))       # (R, S)

        # Late normalization: out_aug[:, :Cx] = p @ x, out_aug[:, Cx] = sum(p).
        out_aug = jnp.dot(p, xa, preferred_element_type=jnp.float32)        # (R, Cx+1)
        denom = out_aug[:, cx:cx + 1]
        inv = pl.reciprocal(denom, approx=True)     # EUP vrcp (free slot)
        inv = inv * (2.0 - denom * inv)             # one Newton step -> ~f32 exact
        out_ref[0] = (out_aug[:, :cx] * inv).astype(out_ref.dtype)

    return sapa_kernel


def prepare_sapa_params(params, *, embedding_dim, dim_y, dim_x_half):
    """Fold LN affine + 1/sqrt(head) into the projections and pack into one
    (Cy + Cx + 2, E) operand.  Call ONCE at parameter-load time (not per call)."""
    gy, by, gx, bx, wq, bq, wk, bk = params
    E = embedding_dim
    head = int(dim_y / E)
    inv_scale = 1.0 / math.sqrt(head)

    wq_t = jnp.transpose(wq)                      # (Cy, E)
    wk_t = jnp.transpose(wk)                      # (Cx, E)
    # q = LN(y) @ Wq^T + bq = norm(y) @ (gy[:,None] * Wq^T) + (by @ Wq^T + bq)
    wq_f = gy[:, None] * wq_t * inv_scale
    bq_f = (by @ wq_t + bq) * inv_scale
    wk_f = gx[:, None] * wk_t
    bk_f = bx @ wk_t + bk
    packed = jnp.concatenate(
        [wq_f, wk_f, bq_f[None, :], bk_f[None, :]], axis=0)  # (Cy + Cx + 2, E)
    return packed.astype(jnp.float32)


def make_block_diag_mask(n_groups, wy, wx, neg=-1e30):
    """Additive mask: row r (group r // wy) may only attend to key s with the
    same group (s // wx).  With the batch folded, groups are b*H + h."""
    r = jnp.arange(n_groups * wy)[:, None] // wy
    c = jnp.arange(n_groups * wx)[None, :] // wx
    return jnp.where(r == c, 0.0, neg).astype(jnp.float32)


def single_tensorcore_chip():
    """True for single-TC chips (v5e / v6e) -> fold the batch into one grid step.
    v7x has two TensorCores: keep the batch on a 'parallel' grid axis."""
    try:
        kind = jax.devices()[0].device_kind.lower()
    except Exception:
        return True
    return ("v7" not in kind) and ("7x" not in kind)


def sapa_forward(y_nchw, x_nchw, packed_w, mask, *, embedding_dim, fold_batch):
    """y: (B, dim_y, H, Wy), x: (B, dim_x//2, H, Wx) -> (B, H, Wy, dim_x//2)."""
    B, Cy, H, Wy = y_nchw.shape
    Bx, Cx, Hx, Wx = x_nchw.shape
    assert B == Bx and H == Hx
    E = embedding_dim

    # NCHW -> NHWC and flatten the spatial rows so LN + projections are one
    # big matmul per grid step inside the kernel.
    y = jnp.transpose(y_nchw, (0, 2, 3, 1)).reshape(B, H * Wy, Cy)
    x = jnp.transpose(x_nchw, (0, 2, 3, 1)).reshape(B, H * Wx, Cx)
    # Ones column for the fused denominator (late-normalization trick).
    xa = jnp.concatenate([x, jnp.ones((B, H * Wx, 1), x.dtype)], axis=-1)

    if fold_batch:
        # One grid step for the whole batch (single-TC chips): flattened row
        # index is (b*H + h)*W + w, so the mask group is b*H + h automatically.
        y = y.reshape(1, B * H * Wy, Cy)
        xa = xa.reshape(1, B * H * Wx, Cx + 1)
        nb = 1
    else:
        nb = B
    R, S = y.shape[1], xa.shape[1]
    assert mask.shape == (R, S), "mask must match the (folded) grid layout"

    # Advisory cost estimate (helps XLA schedule around the custom call).
    flops = int(nb * (7 * (R * Cy + S * Cx)
                      + 2 * R * Cy * E + 2 * S * Cx * E
                      + 2 * R * S * E
                      + 3 * R * S
                      + 2 * R * S * (Cx + 1)
                      + 3 * R * Cx))
    transcendentals = int(nb * (R * S + 2 * R + S))
    bytes_accessed = int(4 * (nb * (R * Cy + S * (Cx + 1) + R * Cx)
                              + R * S + (Cy + Cx + 2) * E))

    out_flat = pl.pallas_call(
        _make_sapa_kernel(Cy, Cx, E),
        out_shape=jax.ShapeDtypeStruct((nb, R, Cx), y_nchw.dtype),
        grid_spec=pltpu.PrefetchScalarGridSpec(
            num_scalar_prefetch=0,
            grid=(nb,),
            in_specs=[
                pl.BlockSpec((1, R, Cy), lambda b: (b, 0, 0)),       # y (NHWC, flat)
                pl.BlockSpec((1, S, Cx + 1), lambda b: (b, 0, 0)),   # [x | ones]
                pl.BlockSpec((R, S), lambda b: (0, 0)),              # resident mask
                pl.BlockSpec((Cy + Cx + 2, E), lambda b: (0, 0)),    # packed params
            ],
            out_specs=pl.BlockSpec((1, R, Cx), lambda b: (b, 0, 0)),
        ),
        compiler_params=pltpu.CompilerParams(
            dimension_semantics=("parallel",)),
        cost_estimate=pl.CostEstimate(
            flops=flops, transcendentals=transcendentals,
            bytes_accessed=bytes_accessed),
    )(y, xa, mask, packed_w)

    return out_flat.reshape(B, H, Wy, Cx)


def sapa_reference(y_nchw, x_nchw, params, *, embedding_dim):
    """Pure-JAX reference replicating the PyTorch forward."""
    gy, by, gx, bx, wq, bq, wk, bk = params
    Cy = y_nchw.shape[1]
    head_size = int(Cy / embedding_dim)
    y = jnp.transpose(y_nchw, (0, 2, 3, 1))
    x = jnp.transpose(x_nchw, (0, 2, 3, 1))

    def ln(v, g, b):
        mu = jnp.mean(v, axis=-1, keepdims=True)
        var = jnp.mean((v - mu) ** 2, axis=-1, keepdims=True)
        return (v - mu) / jnp.sqrt(var + 1e-5) * g + b

    yn = ln(y, gy, by)
    xn = ln(x, gx, bx)
    q = yn @ wq.T + bq
    k = xn @ wk.T + bk
    scores = jnp.einsum("bhqe,bhke->bhqk", q, k) / math.sqrt(head_size)
    probs = jax.nn.softmax(scores, axis=-1)
    return jnp.einsum("bhqk,bhkc->bhqc", probs, x)


if __name__ == "__main__":
    # Small shapes consistent with the module:
    #   dim_y = 32, dim_x = 8 (x has dim_x//2 = 4 channels), embedding_dim = 16
    #   => attention_head_size = int(32 / 16) = 2
    B, H = 2, 8
    dim_y, dim_x, E = 32, 8, 16
    Cx = dim_x // 2
    Wy, Wx = 8, 8

    key = jax.random.PRNGKey(0)
    k1, k2, k3, k4, k5, k6 = jax.random.split(key, 6)

    y = jax.random.normal(k1, (B, dim_y, H, Wy), dtype=jnp.float32)
    x = jax.random.normal(k2, (B, Cx, H, Wx), dtype=jnp.float32)

    # Deterministic parameter init (PyTorch-like: LN gamma=1/beta=0, Linear uniform)
    gamma_y = jnp.ones((dim_y,), jnp.float32)
    beta_y = jnp.zeros((dim_y,), jnp.float32)
    gamma_x = jnp.ones((Cx,), jnp.float32)
    beta_x = jnp.zeros((Cx,), jnp.float32)
    bound_q = 1.0 / math.sqrt(dim_y)
    bound_k = 1.0 / math.sqrt(Cx)
    wq = jax.random.uniform(k3, (E, dim_y), jnp.float32, -bound_q, bound_q)
    bq = jax.random.uniform(k4, (E,), jnp.float32, -bound_q, bound_q)
    wk = jax.random.uniform(k5, (E, Cx), jnp.float32, -bound_k, bound_k)
    bk = jax.random.uniform(k6, (E,), jnp.float32, -bound_k, bound_k)
    params = (gamma_y, beta_y, gamma_x, beta_x, wq, bq, wk, bk)

    # ---- load-time prep (hoisted out of the forward path) ----
    packed_w = prepare_sapa_params(params, embedding_dim=E,
                                   dim_y=dim_y, dim_x_half=Cx)
    fold = single_tensorcore_chip()             # v5e/v6e: fold batch; v7x: keep grid=(B,)
    n_groups = (B * H) if fold else H
    mask = make_block_diag_mask(n_groups, Wy, Wx)

    fwd = jax.jit(sapa_forward, static_argnames=("embedding_dim", "fold_batch"))
    out = fwd(y, x, packed_w, mask, embedding_dim=E, fold_batch=fold)
    out = jax.block_until_ready(out)

    ref = sapa_reference(y, x, params, embedding_dim=E)
    assert out.shape == (B, H, Wy, Cx)
    assert jnp.allclose(out, ref, atol=1e-4, rtol=1e-4), "mismatch vs reference"

    print("KERNEL_OK")
</pallas_src>

<mosaic_0001>
module attributes {stable_mosaic.version = 11 : i64} {
  func.func @sapa_kernel(%arg0: i32, %arg1: memref<1x128x32xf32, #tpu.memory_space<vmem>>, %arg2: memref<1x128x5xf32, #tpu.memory_space<vmem>>, %arg3: memref<128x128xf32, #tpu.memory_space<vmem>>, %arg4: memref<38x16xf32, #tpu.memory_space<vmem>>, %arg5: memref<1x128x4xf32, #tpu.memory_space<vmem>>) attributes {dimension_semantics = [#tpu.dimension_semantics<parallel>], iteration_bounds = array<i64: 1>, scalar_prefetch = 0 : i64, scratch_operands = 0 : i64, tpu.core_type = #tpu.core_type<tc>, window_params = [{transform_indices = @transform_0, window_bounds = array<i64: 1, 128, 32>}, {transform_indices = @transform_1, window_bounds = array<i64: 1, 128, 5>}, {pipeline_mode = #tpu.pipeline_mode<synchronous>, transform_indices = @transform_2, window_bounds = array<i64: 128, 128>}, {pipeline_mode = #tpu.pipeline_mode<synchronous>, transform_indices = @transform_3, window_bounds = array<i64: 38, 16>}, {transform_indices = @transform_4, window_bounds = array<i64: 1, 128, 4>}]} {
    %c0 = arith.constant 0 : index
    %c0_0 = arith.constant 0 : index
    %c0_1 = arith.constant 0 : index
    %0 = vector.load %arg1[%c0, %c0_0, %c0_1] : memref<1x128x32xf32, #tpu.memory_space<vmem>>, vector<1x128x32xf32>
    %1 = vector.shape_cast %0 : vector<1x128x32xf32> to vector<128x32xf32>
    %c0_2 = arith.constant 0 : index
    %c0_3 = arith.constant 0 : index
    %c0_4 = arith.constant 0 : index
    %2 = vector.load %arg2[%c0_2, %c0_3, %c0_4] : memref<1x128x5xf32, #tpu.memory_space<vmem>>, vector<1x128x5xf32>
    %3 = vector.shape_cast %2 : vector<1x128x5xf32> to vector<128x5xf32>
    %4 = vector.extract_strided_slice %3 {offsets = [0, 0], sizes = [128, 4], strides = [1, 1]} : vector<128x5xf32> to vector<128x4xf32>
    %c0_5 = arith.constant 0 : index
    %c0_6 = arith.constant 0 : index
    %5 = vector.load %arg4[%c0_5, %c0_6] : memref<38x16xf32, #tpu.memory_space<vmem>>, vector<38x16xf32>
    %6 = vector.extract_strided_slice %5 {offsets = [0, 0], sizes = [32, 16], strides = [1, 1]} : vector<38x16xf32> to vector<32x16xf32>
    %7 = vector.extract_strided_slice %5 {offsets = [32, 0], sizes = [4, 16], strides = [1, 1]} : vector<38x16xf32> to vector<4x16xf32>
    %8 = vector.extract_strided_slice %5 {offsets = [36, 0], sizes = [1, 16], strides = [1, 1]} : vector<38x16xf32> to vector<1x16xf32>
    %9 = vector.extract_strided_slice %5 {offsets = [37, 0], sizes = [1, 16], strides = [1, 1]} : vector<38x16xf32> to vector<1x16xf32>
    %cst = arith.constant dense<0.000000e+00> : vector<128xf32>
    %10 = vector.multi_reduction <add>, %1, %cst [1] : vector<128x32xf32> to vector<128xf32>
    %11 = vector.shape_cast %10 : vector<128xf32> to vector<128x1xf32>
    %cst_7 = arith.constant 3.200000e+01 : f32
    %12 = vector.broadcast %cst_7 : f32 to vector<128x1xf32>
    %13 = arith.divf %11, %12 : vector<128x1xf32>
    %14 = vector.broadcast %13 : vector<128x1xf32> to vector<128x32xf32>
    %15 = arith.subf %1, %14 : vector<128x32xf32>
    %16 = arith.mulf %15, %15 : vector<128x32xf32>
    %cst_8 = arith.constant dense<0.000000e+00> : vector<128xf32>
    %17 = vector.multi_reduction <add>, %16, %cst_8 [1] : vector<128x32xf32> to vector<128xf32>
    %18 = vector.shape_cast %17 : vector<128xf32> to vector<128x1xf32>
    %cst_9 = arith.constant 3.200000e+01 : f32
    %19 = vector.broadcast %cst_9 : f32 to vector<128x1xf32>
    %20 = arith.divf %18, %19 : vector<128x1xf32>
    %cst_10 = arith.constant 9.99999974E-6 : f32
    %21 = vector.broadcast %cst_10 : f32 to vector<128x1xf32>
    %22 = arith.addf %20, %21 : vector<128x1xf32>
    %23 = math.rsqrt %22 : vector<128x1xf32>
    %24 = vector.broadcast %23 : vector<128x1xf32> to vector<128x32xf32>
    %25 = arith.mulf %15, %24 : vector<128x32xf32>
    %cst_11 = arith.constant dense<0.000000e+00> : vector<128x16xf32>
    %26 = tpu.matmul %25, %6, %cst_11 {dimension_numbers = #tpu.dot_dimension_numbers<[1], [0], [0], [1], [0, 0, 1, 1], [], []>} : vector<128x32xf32>, vector<32x16xf32>, vector<128x16xf32> -> vector<128x16xf32>
    %27 = vector.broadcast %8 : vector<1x16xf32> to vector<128x16xf32>
    %28 = arith.addf %26, %27 : vector<128x16xf32>
    %cst_12 = arith.constant dense<0.000000e+00> : vector<128xf32>
    %29 = vector.multi_reduction <add>, %4, %cst_12 [1] : vector<128x4xf32> to vector<128xf32>
    %30 = vector.shape_cast %29 : vector<128xf32> to vector<128x1xf32>
    %cst_13 = arith.constant 4.000000e+00 : f32
    %31 = vector.broadcast %cst_13 : f32 to vector<128x1xf32>
    %32 = arith.divf %30, %31 : vector<128x1xf32>
    %33 = vector.broadcast %32 : vector<128x1xf32> to vector<128x4xf32>
    %34 = arith.subf %4, %33 : vector<128x4xf32>
    %35 = arith.mulf %34, %34 : vector<128x4xf32>
    %cst_14 = arith.constant dense<0.000000e+00> : vector<128xf32>
    %36 = vector.multi_reduction <add>, %35, %cst_14 [1] : vector<128x4xf32> to vector<128xf32>
    %37 = vector.shape_cast %36 : vector<128xf32> to vector<128x1xf32>
    %cst_15 = arith.constant 4.000000e+00 : f32
    %38 = vector.broadcast %cst_15 : f32 to vector<128x1xf32>
    %39 = arith.divf %37, %38 : vector<128x1xf32>
    %cst_16 = arith.constant 9.99999974E-6 : f32
    %40 = vector.broadcast %cst_16 : f32 to vector<128x1xf32>
    %41 = arith.addf %39, %40 : vector<128x1xf32>
    %42 = math.rsqrt %41 : vector<128x1xf32>
    %43 = vector.broadcast %42 : vector<128x1xf32> to vector<128x4xf32>
    %44 = arith.mulf %34, %43 : vector<128x4xf32>
    %cst_17 = arith.constant dense<0.000000e+00> : vector<128x16xf32>
    %45 = tpu.matmul %44, %7, %cst_17 {dimension_numbers = #tpu.dot_dimension_numbers<[1], [0], [0], [1], [0, 0, 1, 1], [], []>} : vector<128x4xf32>, vector<4x16xf32>, vector<128x16xf32> -> vector<128x16xf32>
    %46 = vector.broadcast %9 : vector<1x16xf32> to vector<128x16xf32>
    %47 = arith.addf %45, %46 : vector<128x16xf32>
    %cst_18 = arith.constant dense<0.000000e+00> : vector<128x128xf32>
    %48 = tpu.matmul %28, %47, %cst_18 {dimension_numbers = #tpu.dot_dimension_numbers<[1], [1], [0], [0], [0, 0, 1, 0], [], []>} : vector<128x16xf32>, vector<128x16xf32>, vector<128x128xf32> -> vector<128x128xf32>
    %c0_19 = arith.constant 0 : index
    %c0_20 = arith.constant 0 : index
    %49 = vector.load %arg3[%c0_19, %c0_20] : memref<128x128xf32, #tpu.memory_space<vmem>>, vector<128x128xf32>
    %50 = arith.addf %48, %49 : vector<128x128xf32>
    %cst_21 = arith.constant dense<0xFF800000> : vector<128xf32>
    %51 = vector.multi_reduction <maximumf>, %50, %cst_21 [1] : vector<128x128xf32> to vector<128xf32>
    %52 = vector.shape_cast %51 : vector<128xf32> to vector<128x1xf32>
    %53 = vector.broadcast %52 : vector<128x1xf32> to vector<128x128xf32>
    %54 = arith.subf %50, %53 : vector<128x128xf32>
    %55 = math.exp %54 : vector<128x128xf32>
    %cst_22 = arith.constant dense<0.000000e+00> : vector<128x5xf32>
    %56 = tpu.matmul %55, %3, %cst_22 {dimension_numbers = #tpu.dot_dimension_numbers<[1], [0], [0], [1], [0, 0, 1, 1], [], []>} : vector<128x128xf32>, vector<128x5xf32>, vector<128x5xf32> -> vector<128x5xf32>
    %57 = vector.extract_strided_slice %56 {offsets = [0, 4], sizes = [128, 1], strides = [1, 1]} : vector<128x5xf32> to vector<128x1xf32>
    %58 = tpu.reciprocal %57 {approx = true} : vector<128x1xf32> -> vector<128x1xf32>
    %59 = arith.mulf %57, %58 : vector<128x1xf32>
    %cst_23 = arith.constant 2.000000e+00 : f32
    %60 = vector.broadcast %cst_23 : f32 to vector<128x1xf32>
    %61 = arith.subf %60, %59 : vector<128x1xf32>
    %62 = arith.mulf %58, %61 : vector<128x1xf32>
    %63 = vector.extract_strided_slice %56 {offsets = [0, 0], sizes = [128, 4], strides = [1, 1]} : vector<128x5xf32> to vector<128x4xf32>
    %64 = vector.broadcast %62 : vector<128x1xf32> to vector<128x4xf32>
    %65 = arith.mulf %63, %64 : vector<128x4xf32>
    %c0_24 = arith.constant 0 : index
    %c0_25 = arith.constant 0 : index
    %c0_26 = arith.constant 0 : index
    %66 = vector.load %arg5[%c0_24, %c0_25, %c0_26] : memref<1x128x4xf32, #tpu.memory_space<vmem>>, vector<1x128x4xf32>
    %67 = vector.shape_cast %66 : vector<1x128x4xf32> to vector<128x4xf32>
    %68 = vector.shape_cast %65 : vector<128x4xf32> to vector<1x128x4xf32>
    tpu.vector_store %arg5[%c0_24, %c0_25, %c0_26], %68 {strides = array<i32>} : memref<1x128x4xf32, #tpu.memory_space<vmem>>, vector<1x128x4xf32>,
    return
  }
  func.func @transform_0(%arg0: i32) -> (i32, i32, i32) {
    %c0_i32 = arith.constant 0 : i32
    %c0_i32_0 = arith.constant 0 : i32
    %c0_i32_1 = arith.constant 0 : i32
    return %arg0, %c0_i32, %c0_i32_0 : i32, i32, i32
  }
  func.func @transform_1(%arg0: i32) -> (i32, i32, i32) {
    %c0_i32 = arith.constant 0 : i32
    %c0_i32_0 = arith.constant 0 : i32
    %c0_i32_1 = arith.constant 0 : i32
    return %arg0, %c0_i32, %c0_i32_0 : i32, i32, i32
  }
  func.func @transform_2(%arg0: i32) -> (i32, i32) {
    %c0_i32 = arith.constant 0 : i32
    %c0_i32_0 = arith.constant 0 : i32
    %c0_i32_1 = arith.constant 0 : i32
    return %c0_i32, %c0_i32_0 : i32, i32
  }
  func.func @transform_3(%arg0: i32) -> (i32, i32) {
    %c0_i32 = arith.constant 0 : i32
    %c0_i32_0 = arith.constant 0 : i32
    %c0_i32_1 = arith.constant 0 : i32
    return %c0_i32, %c0_i32_0 : i32, i32
  }
  func.func @transform_4(%arg0: i32) -> (i32, i32, i32) {
    %c0_i32 = arith.constant 0 : i32
    %c0_i32_0 = arith.constant 0 : i32
    %c0_i32_1 = arith.constant 0 : i32
    return %arg0, %c0_i32, %c0_i32_0 : i32, i32, i32
  }
}

</mosaic_0001>

<llo_original>
// kernel: sapa_forward.1
$region0: #{sapa_forward.1}
  #allocation0 [shape = 'u32[]', space=smem, size = 0x4, offset = 0x4, fixed_abs, tag = 'smem constant byte address 0x4 - core index']
  #allocation1 [shape = 'u32[144,128]{1,0:T(1,128)}', space=vmem, size = 0x12000, scoped, tag = 'internal scratch']
  %s0 = inlined_call_operand.vmem [shape: f32[1,128,32], index: 0, kind: input, shape index: {}]
  %s1 = inlined_call_operand.vmem [shape: f32[1,128,5], index: 1, kind: input, shape index: {}]
  %s2 = inlined_call_operand.vmem [shape: f32[128,128], index: 2, kind: input, shape index: {}]
  %s3 = inlined_call_operand.vmem [shape: f32[38,16], index: 3, kind: input, shape index: {}]
  %s4 = inlined_call_operand.vmem [shape: f32[1,128,4], index: 4, kind: output, shape index: {}]
  %s5 = sld [smem:[#allocation0]]
  $region26: #{sapa_forward.1} parent=0
    _
  %s7 = ssub.s32 1, %s5
  %s8 = scalar_select 0, %s7, %s5
  // Predicated region
  $region2: #{sapa_forward.1} parent=0 // pred_check
    _
  $region3: #{sapa_forward.1} parent=0 // pred_check_branch
    %10 = sbr.rel (0) target = $region5
  $region4: #{sapa_forward.1} parent=0 // pred_region
    _
  $region5: #{sapa_forward.1} parent=0 // pred_fallthru
    _
  // Predicated region
  $region6: #{sapa_forward.1} parent=0 // pred_check
    _
  $region7: #{sapa_forward.1} parent=0 // pred_check_branch
    %12 = sbr.rel (0) target = $region9
  $region8: #{sapa_forward.1} parent=0 // pred_region
    _
  $region9: #{sapa_forward.1} parent=0 // pred_fallthru
    _
  // Predicated region
  $region10: #{sapa_forward.1} parent=0 // pred_check
    _
  $region11: #{sapa_forward.1} parent=0 // pred_check_branch
    %14 = sbr.rel (0) target = $region13
  $region12: #{sapa_forward.1} parent=0 // pred_region
    _
  $region13: #{sapa_forward.1} parent=0 // pred_fallthru
    _
  // Predicated region
  $region14: #{sapa_forward.1} parent=0 // pred_check
    _
  $region15: #{sapa_forward.1} parent=0 // pred_check_branch
    %16 = sbr.rel (0) target = $region17
  $region16: #{sapa_forward.1} parent=0 // pred_region
    _
  $region17: #{sapa_forward.1} parent=0 // pred_fallthru
    _
  %v17 = vld [vmem:[%s0] sm:$0xff]
  %v18 = vld [vmem:[%s0 + $0x8] sm:$0xff]
  %v19 = vld [vmem:[%s0 + $0x10] sm:$0xff]
  %v20 = vld [vmem:[%s0 + $0x18] sm:$0xff]
  %v21 = vld [vmem:[%s0 + $0x20] sm:$0xff]
  %v22 = vld [vmem:[%s0 + $0x28] sm:$0xff]
  %v23 = vld [vmem:[%s0 + $0x30] sm:$0xff]
  %v24 = vld [vmem:[%s0 + $0x38] sm:$0xff]
  %v25 = vld [vmem:[%s0 + $0x40] sm:$0xff]
  %v26 = vld [vmem:[%s0 + $0x48] sm:$0xff]
  %v27 = vld [vmem:[%s0 + $0x50] sm:$0xff]
  %v28 = vld [vmem:[%s0 + $0x58] sm:$0xff]
  %v29 = vld [vmem:[%s0 + $0x60] sm:$0xff]
  %v30 = vld [vmem:[%s0 + $0x68] sm:$0xff]
  %v31 = vld [vmem:[%s0 + $0x70] sm:$0xff]
  %v32 = vld [vmem:[%s0 + $0x78] sm:$0xff]
  %v33 = vld [vmem:[%s1] sm:$0xff]
  %v34 = vld [vmem:[%s1 + $0x8] sm:$0xff]
  %v35 = vld [vmem:[%s1 + $0x10] sm:$0xff]
  %v36 = vld [vmem:[%s1 + $0x18] sm:$0xff]
  %v37 = vld [vmem:[%s1 + $0x20] sm:$0xff]
  %v38 = vld [vmem:[%s1 + $0x28] sm:$0xff]
  %v39 = vld [vmem:[%s1 + $0x30] sm:$0xff]
  %v40 = vld [vmem:[%s1 + $0x38] sm:$0xff]
  %v41 = vld [vmem:[%s1 + $0x40] sm:$0xff]
  %v42 = vld [vmem:[%s1 + $0x48] sm:$0xff]
  %v43 = vld [vmem:[%s1 + $0x50] sm:$0xff]
  %v44 = vld [vmem:[%s1 + $0x58] sm:$0xff]
  %v45 = vld [vmem:[%s1 + $0x60] sm:$0xff]
  %v46 = vld [vmem:[%s1 + $0x68] sm:$0xff]
  %v47 = vld [vmem:[%s1 + $0x70] sm:$0xff]
  %v48 = vld [vmem:[%s1 + $0x78] sm:$0xff]
  %v49 = vld [vmem:[%s3] sm:$0xff]
  %v50 = vld [vmem:[%s3 + $0x8] sm:$0xff]
  %v51 = vld [vmem:[%s3 + $0x10] sm:$0xff]
  %v52 = vld [vmem:[%s3 + $0x18] sm:$0xff]
  %v53 = vld [vmem:[%s3 + $0x20] sm:$0x3f]
  %vm54 = vcmask 261120
  %v55 = vsel %vm54, %v17, 0.0
  %56 = vadd.xlane.f32.xlu0 %v55
  %v57 = vpop.xlane.xlu0 %56
  %v58 = vsel %vm54, %v18, 0.0
  %59 = vadd.xlane.f32.xlu0 %v58
  %v60 = vpop.xlane.xlu0 %59
  %v61 = vsel %vm54, %v19, 0.0
  %62 = vadd.xlane.f32.xlu0 %v61
  %v63 = vpop.xlane.xlu0 %62
  %v64 = vsel %vm54, %v20, 0.0
  %65 = vadd.xlane.f32.xlu0 %v64
  %v66 = vpop.xlane.xlu0 %65
  %v67 = vsel %vm54, %v21, 0.0
  %68 = vadd.xlane.f32.xlu0 %v67
  %v69 = vpop.xlane.xlu0 %68
  %v70 = vsel %vm54, %v22, 0.0
  %71 = vadd.xlane.f32.xlu0 %v70
  %v72 = vpop.xlane.xlu0 %71
  %v73 = vsel %vm54, %v23, 0.0
  %74 = vadd.xlane.f32.xlu0 %v73
  %v75 = vpop.xlane.xlu0 %74
  %v76 = vsel %vm54, %v24, 0.0
  %77 = vadd.xlane.f32.xlu0 %v76
  %v78 = vpop.xlane.xlu0 %77
  %v79 = vsel %vm54, %v25, 0.0
  %80 = vadd.xlane.f32.xlu0 %v79
  %v81 = vpop.xlane.xlu0 %80
  %v82 = vsel %vm54, %v26, 0.0
  %83 = vadd.xlane.f32.xlu0 %v82
  %v84 = vpop.xlane.xlu0 %83
  %v85 = vsel %vm54, %v27, 0.0
  %86 = vadd.xlane.f32.xlu0 %v85
  %v87 = vpop.xlane.xlu0 %86
  %v88 = vsel %vm54, %v28, 0.0
  %89 = vadd.xlane.f32.xlu0 %v88
  %v90 = vpop.xlane.xlu0 %89
  %v91 = vsel %vm54, %v29, 0.0
  %92 = vadd.xlane.f32.xlu0 %v91
  %v93 = vpop.xlane.xlu0 %92
  %v94 = vsel %vm54, %v30, 0.0
  %95 = vadd.xlane.f32.xlu0 %v94
  %v96 = vpop.xlane.xlu0 %95
  %v97 = vsel %vm54, %v31, 0.0
  %98 = vadd.xlane.f32.xlu0 %v97
  %v99 = vpop.xlane.xlu0 %98
  %v100 = vsel %vm54, %v32, 0.0
  %101 = vadd.xlane.f32.xlu0 %v100
  %v102 = vpop.xlane.xlu0 %101
  %v103 = vrcp.pop 32.0
  %v104 = vmul.f32 %v57, %v103
  %v105 = vmul.f32 %v60, %v103
  %v106 = vmul.f32 %v63, %v103
  %v107 = vmul.f32 %v66, %v103
  %v108 = vmul.f32 %v69, %v103
  %v109 = vmul.f32 %v72, %v103
  %v110 = vmul.f32 %v75, %v103
  %v111 = vmul.f32 %v78, %v103
  %v112 = vmul.f32 %v81, %v103
  %v113 = vmul.f32 %v84, %v103
  %v114 = vmul.f32 %v87, %v103
  %v115 = vmul.f32 %v90, %v103
  %v116 = vmul.f32 %v93, %v103
  %v117 = vmul.f32 %v96, %v103
  %v118 = vmul.f32 %v99, %v103
  %v119 = vmul.f32 %v102, %v103
  %v120 = vsub.f32 %v17, %v104
  %v121 = vsub.f32 %v18, %v105
  %v122 = vsub.f32 %v19, %v106
  %v123 = vsub.f32 %v20, %v107
  %v124 = vsub.f32 %v21, %v108
  %v125 = vsub.f32 %v22, %v109
  %v126 = vsub.f32 %v23, %v110
  %v127 = vsub.f32 %v24, %v111
  %v128 = vsub.f32 %v25, %v112
  %v129 = vsub.f32 %v26, %v113
  %v130 = vsub.f32 %v27, %v114
  %v131 = vsub.f32 %v28, %v115
  %v132 = vsub.f32 %v29, %v116
  %v133 = vsub.f32 %v30, %v117
  %v134 = vsub.f32 %v31, %v118
  %v135 = vsub.f32 %v32, %v119
  %v136 = vmul.f32 %v120, %v120
  %v137 = vmul.f32 %v121, %v121
  %v138 = vmul.f32 %v122, %v122
  %v139 = vmul.f32 %v123, %v123
  %v140 = vmul.f32 %v124, %v124
  %v141 = vmul.f32 %v125, %v125
  %v142 = vmul.f32 %v126, %v126
  %v143 = vmul.f32 %v127, %v127
  %v144 = vmul.f32 %v128, %v128
  %v145 = vmul.f32 %v129, %v129
  %v146 = vmul.f32 %v130, %v130
  %v147 = vmul.f32 %v131, %v131
  %v148 = vmul.f32 %v132, %v132
  %v149 = vmul.f32 %v133, %v133
  %v150 = vmul.f32 %v134, %v134
  %v151 = vmul.f32 %v135, %v135
  %v152 = vsel %vm54, %v136, 0.0
  %153 = vadd.xlane.f32.xlu0 %v152
  %v154 = vpop.xlane.xlu0 %153
  %v155 = vsel %vm54, %v137, 0.0
  %156 = vadd.xlane.f32.xlu0 %v155
  %v157 = vpop.xlane.xlu0 %156
  %v158 = vsel %vm54, %v138, 0.0
  %159 = vadd.xlane.f32.xlu0 %v158
  %v160 = vpop.xlane.xlu0 %159
  %v161 = vsel %vm54, %v139, 0.0
  %162 = vadd.xlane.f32.xlu0 %v161
  %v163 = vpop.xlane.xlu0 %162
  %v164 = vsel %vm54, %v140, 0.0
  %165 = vadd.xlane.f32.xlu0 %v164
  %v166 = vpop.xlane.xlu0 %165
  %v167 = vsel %vm54, %v141, 0.0
  %168 = vadd.xlane.f32.xlu0 %v167
  %v169 = vpop.xlane.xlu0 %168
  %v170 = vsel %vm54, %v142, 0.0
  %171 = vadd.xlane.f32.xlu0 %v170
  %v172 = vpop.xlane.xlu0 %171
  %v173 = vsel %vm54, %v143, 0.0
  %174 = vadd.xlane.f32.xlu0 %v173
  %v175 = vpop.xlane.xlu0 %174
  %v176 = vsel %vm54, %v144, 0.0
  %177 = vadd.xlane.f32.xlu0 %v176
  %v178 = vpop.xlane.xlu0 %177
  %v179 = vsel %vm54, %v145, 0.0
  %180 = vadd.xlane.f32.xlu0 %v179
  %v181 = vpop.xlane.xlu0 %180
  %v182 = vsel %vm54, %v146, 0.0
  %183 = vadd.xlane.f32.xlu0 %v182
  %v184 = vpop.xlane.xlu0 %183
  %v185 = vsel %vm54, %v147, 0.0
  %186 = vadd.xlane.f32.xlu0 %v185
  %v187 = vpop.xlane.xlu0 %186
  %v188 = vsel %vm54, %v148, 0.0
  %189 = vadd.xlane.f32.xlu0 %v188
  %v190 = vpop.xlane.xlu0 %189
  %v191 = vsel %vm54, %v149, 0.0
  %192 = vadd.xlane.f32.xlu0 %v191
  %v193 = vpop.xlane.xlu0 %192
  %v194 = vsel %vm54, %v150, 0.0
  %195 = vadd.xlane.f32.xlu0 %v194
  %v196 = vpop.xlane.xlu0 %195
  %v197 = vsel %vm54, %v151, 0.0
  %198 = vadd.xlane.f32.xlu0 %v197
  %v199 = vpop.xlane.xlu0 %198
  %v200 = vmul.f32 %v154, %v103
  %v201 = vmul.f32 %v157, %v103
  %v202 = vmul.f32 %v160, %v103
  %v203 = vmul.f32 %v163, %v103
  %v204 = vmul.f32 %v166, %v103
  %v205 = vmul.f32 %v169, %v103
  %v206 = vmul.f32 %v172, %v103
  %v207 = vmul.f32 %v175, %v103
  %v208 = vmul.f32 %v178, %v103
  %v209 = vmul.f32 %v181, %v103
  %v210 = vmul.f32 %v184, %v103
  %v211 = vmul.f32 %v187, %v103
  %v212 = vmul.f32 %v190, %v103
  %v213 = vmul.f32 %v193, %v103
  %v214 = vmul.f32 %v196, %v103
  %v215 = vmul.f32 %v199, %v103
  %v216 = vadd.f32 %v200, 1e-05
  %v217 = vadd.f32 %v201, 1e-05
  %v218 = vadd.f32 %v202, 1e-05
  %v219 = vadd.f32 %v203, 1e-05
  %v220 = vadd.f32 %v204, 1e-05
  %v221 = vadd.f32 %v205, 1e-05
  %v222 = vadd.f32 %v206, 1e-05
  %v223 = vadd.f32 %v207, 1e-05
  %v224 = vadd.f32 %v208, 1e-05
  %v225 = vadd.f32 %v209, 1e-05
  %v226 = vadd.f32 %v210, 1e-05
  %v227 = vadd.f32 %v211, 1e-05
  %v228 = vadd.f32 %v212, 1e-05
  %v229 = vadd.f32 %v213, 1e-05
  %v230 = vadd.f32 %v214, 1e-05
  %v231 = vadd.f32 %v215, 1e-05
  %v232 = vrsqrt.pop %v216
  %v233 = vrsqrt.pop %v217
  %v234 = vrsqrt.pop %v218
  %v235 = vrsqrt.pop %v219
  %v236 = vrsqrt.pop %v220
  %v237 = vrsqrt.pop %v221
  %v238 = vrsqrt.pop %v222
  %v239 = vrsqrt.pop %v223
  %v240 = vrsqrt.pop %v224
  %v241 = vrsqrt.pop %v225
  %v242 = vrsqrt.pop %v226
  %v243 = vrsqrt.pop %v227
  %v244 = vrsqrt.pop %v228
  %v245 = vrsqrt.pop %v229
  %v246 = vrsqrt.pop %v230
  %v247 = vrsqrt.pop %v231
  %v248 = vmul.f32 %v120, %v232
  %v249 = vmul.f32 %v121, %v233
  %v250 = vmul.f32 %v122, %v234
  %v251 = vmul.f32 %v123, %v235
  %v252 = vmul.f32 %v124, %v236
  %v253 = vmul.f32 %v125, %v237
  %v254 = vmul.f32 %v126, %v238
  %v255 = vmul.f32 %v127, %v239
  %v256 = vmul.f32 %v128, %v240
  %v257 = vmul.f32 %v129, %v241
  %v258 = vmul.f32 %v130, %v242
  %v259 = vmul.f32 %v131, %v243
  %v260 = vmul.f32 %v132, %v244
  %v261 = vmul.f32 %v133, %v245
  %v262 = vmul.f32 %v134, %v246
  %v263 = vmul.f32 %v135, %v247
  %v264 = vlaneseq
  %v265 = vshrl.u32 %v264, 7
  %v266 = vsub.s32 4, %v265
  %v267 = vrot.slane %v53, %v266
  %v269 = vsel %vm54, %v248, 0
  %v272 = vsel %vm54, %v249, 0
  %v275 = vsel %vm54, %v250, 0
  %v278 = vsel %vm54, %v251, 0
  %v281 = vsel %vm54, %v252, 0
  %v284 = vsel %vm54, %v253, 0
  %v287 = vsel %vm54, %v254, 0
  %v290 = vsel %vm54, %v255, 0
  %v293 = vsel %vm54, %v256, 0
  %v296 = vsel %vm54, %v257, 0
  %v299 = vsel %vm54, %v258, 0
  %v302 = vsel %vm54, %v259, 0
  %v305 = vsel %vm54, %v260, 0
  %v308 = vsel %vm54, %v261, 0
  %v311 = vsel %vm54, %v262, 0
  %v314 = vsel %vm54, %v263, 0
  %316 = vmatprep.subr.mxu0 0.0
  %317 = vmatpush1.msra.mxu0 %v49
  %318 = vmatprep.subr.mxu0 0.0
  %319 = vmatpush1.msra.mxu0 %v50
  %320 = vmatprep.subr.mxu0 0.0
  %321 = vmatpush1.msra.mxu0 %v51
  %322 = vmatprep.subr.mxu0 0.0
  %323 = vmatpush1.msra.mxu0 %v52
  %324 = vmatprep.subr.mxu0 0.0
  %325 = vmatpush1.msra.mxu0 0.0
  %326 = vmatprep.subr.mxu0 0.0
  %327 = vmatpush1.msra.mxu0 0.0
  %328 = vmatprep.subr.mxu0 0.0
  %329 = vmatpush1.msra.mxu0 0.0
  %330 = vmatprep.subr.mxu0 0.0
  %331 = vmatpush1.msra.mxu0 0.0
  %332 = vmatprep.subr.mxu0 0.0
  %333 = vmatpush1.msra.mxu0 0.0
  %334 = vmatprep.subr.mxu0 0.0
  %335 = vmatpush1.msra.mxu0 0.0
  %336 = vmatprep.subr.mxu0 0.0
  %337 = vmatpush1.msra.mxu0 0.0
  %338 = vmatprep.subr.mxu0 0.0
  %339 = vmatpush1.msra.mxu0 0.0
  %340 = vmatprep.subr.mxu0 0.0
  %341 = vmatpush1.msra.mxu0 0.0
  %342 = vmatprep.subr.mxu0 0.0
  %343 = vmatpush1.msra.mxu0 0.0
  %344 = vmatprep.subr.mxu0 0.0
  %345 = vmatpush1.msra.mxu0 0.0
  %346 = vmatprep.subr.mxu0 0.0
  %347 = vmatpush1.msra.mxu0 0.0
  %348 = vmatprep.subr.mxu0 0.0
  %349 = vmatpush1.msra.mxu0 0.0
  %350 = vmatprep.subr.mxu0 0.0
  %351 = vmatpush1.msra.mxu0 0.0
  %352 = vmatprep.subr.mxu0 0.0
  %353 = vmatpush1.msra.mxu0 0.0
  %354 = vmatprep.subr.mxu0 0.0
  %355 = vmatpush1.msra.mxu0 0.0
  %356 = vmatprep.subr.mxu0 0.0
  %357 = vmatpush1.msra.mxu0 0.0
  %358 = vmatprep.subr.mxu0 0.0
  %359 = vmatpush1.msra.mxu0 0.0
  %360 = vmatprep.subr.mxu0 0.0
  %361 = vmatpush1.msra.mxu0 0.0
  %362 = vmatprep.subr.mxu0 0.0
  %363 = vmatpush1.msra.mxu0 0.0
  %364 = vmatprep.subr.mxu0 0.0
  %365 = vmatpush1.msra.mxu0 0.0
  %366 = vmatprep.subr.mxu0 0.0
  %367 = vmatpush1.msra.mxu0 0.0
  %368 = vmatprep.subr.mxu0 0.0
  %369 = vmatpush1.msra.mxu0 0.0
  %370 = vmatprep.subr.mxu0 0.0
  %371 = vmatpush1.msra.mxu0 0.0
  %372 = vmatprep.subr.mxu0 0.0
  %373 = vmatpush1.msra.mxu0 0.0
  %374 = vmatprep.subr.mxu0 0.0
  %375 = vmatpush1.msra.mxu0 0.0
  %376 = vmatprep.subr.mxu0 0.0
  %377 = vmatpush1.msra.mxu0 0.0
  %378 = vmatprep.subr.mxu0 0.0
  %379 = vmatpush1.msra.mxu0 0.0
  %380 = vmatprep.mubr.f32.mxu0 0.0
  %381 = vmatmul.mubr.f32.gmra.mrb[0].mxu0 %v269
  %v382 = vpop.f32.mrb[0].mxu0
  %v383 = vadd.f32 %v267, %v382
  %v384 = vpop.f32.mrb[0].mxu0
  %385 = vmatprep.mubr.f32.mxu0 0.0
  %386 = vmatmul.mubr.f32.gmra.mrb[0].mxu0 %v272
  %v387 = vpop.f32.mrb[0].mxu0
  %v388 = vadd.f32 %v267, %v387
  %v389 = vpop.f32.mrb[0].mxu0
  %390 = vmatprep.mubr.f32.mxu0 0.0
  %391 = vmatmul.mubr.f32.gmra.mrb[0].mxu0 %v275
  %v392 = vpop.f32.mrb[0].mxu0
  %v393 = vadd.f32 %v267, %v392
  %v394 = vpop.f32.mrb[0].mxu0
  %395 = vmatprep.mubr.f32.mxu0 0.0
  %396 = vmatmul.mubr.f32.gmra.mrb[0].mxu0 %v278
  %v397 = vpop.f32.mrb[0].mxu0
  %v398 = vadd.f32 %v267, %v397
  %v399 = vpop.f32.mrb[0].mxu0
  %400 = vmatprep.mubr.f32.mxu0 0.0
  %401 = vmatmul.mubr.f32.gmra.mrb[0].mxu0 %v281
  %v402 = vpop.f32.mrb[0].mxu0
  %v403 = vadd.f32 %v267, %v402
  %v404 = vpop.f32.mrb[0].mxu0
  %405 = vmatprep.mubr.f32.mxu0 0.0
  %406 = vmatmul.mubr.f32.gmra.mrb[0].mxu0 %v284
  %v407 = vpop.f32.mrb[0].mxu0
  %v408 = vadd.f32 %v267, %v407
  %v409 = vpop.f32.mrb[0].mxu0
  %410 = vmatprep.mubr.f32.mxu0 0.0
  %411 = vmatmul.mubr.f32.gmra.mrb[0].mxu0 %v287
  %v412 = vpop.f32.mrb[0].mxu0
  %v413 = vadd.f32 %v267, %v412
  %v414 = vpop.f32.mrb[0].mxu0
  %415 = vmatprep.mubr.f32.mxu0 0.0
  %416 = vmatmul.mubr.f32.gmra.mrb[0].mxu0 %v290
  %v417 = vpop.f32.mrb[0].mxu0
  %v418 = vadd.f32 %v267, %v417
  %v419 = vpop.f32.mrb[0].mxu0
  %420 = vmatprep.mubr.f32.mxu0 0.0
  %421 = vmatmul.mubr.f32.gmra.mrb[0].mxu0 %v293
  %v422 = vpop.f32.mrb[0].mxu0
  %v423 = vadd.f32 %v267, %v422
  %v424 = vpop.f32.mrb[0].mxu0
  %425 = vmatprep.mubr.f32.mxu0 0.0
  %426 = vmatmul.mubr.f32.gmra.mrb[0].mxu0 %v296
  %v427 = vpop.f32.mrb[0].mxu0
  %v428 = vadd.f32 %v267, %v427
  %v429 = vpop.f32.mrb[0].mxu0
  %430 = vmatprep.mubr.f32.mxu0 0.0
  %431 = vmatmul.mubr.f32.gmra.mrb[0].mxu0 %v299
  %v432 = vpop.f32.mrb[0].mxu0
  %v433 = vadd.f32 %v267, %v432
  %v434 = vpop.f32.mrb[0].mxu0
  %435 = vmatprep.mubr.f32.mxu0 0.0
  %436 = vmatmul.mubr.f32.gmra.mrb[0].mxu0 %v302
  %v437 = vpop.f32.mrb[0].mxu0
  %v438 = vadd.f32 %v267, %v437
  %v439 = vpop.f32.mrb[0].mxu0
  %440 = vmatprep.mubr.f32.mxu0 0.0
  %441 = vmatmul.mubr.f32.gmra.mrb[0].mxu0 %v305
  %v442 = vpop.f32.mrb[0].mxu0
  %v443 = vadd.f32 %v267, %v442
  %v444 = vpop.f32.mrb[0].mxu0
  %445 = vmatprep.mubr.f32.mxu0 0.0
  %446 = vmatmul.mubr.f32.gmra.mrb[0].mxu0 %v308
  %v447 = vpop.f32.mrb[0].mxu0
  %v448 = vadd.f32 %v267, %v447
  %v449 = vpop.f32.mrb[0].mxu0
  %450 = vmatprep.mubr.f32.mxu0 0.0
  %451 = vmatmul.mubr.f32.gmra.mrb[0].mxu0 %v311
  %v452 = vpop.f32.mrb[0].mxu0
  %v453 = vadd.f32 %v267, %v452
  %v454 = vpop.f32.mrb[0].mxu0
  %455 = vmatprep.mubr.f32.mxu0 0.0
  %456 = vmatmul.mubr.f32.gmra.mrb[0].mxu0 %v314
  %v457 = vpop.f32.mrb[0].mxu0
  %v458 = vadd.f32 %v267, %v457
  %v459 = vpop.f32.mrb[0].mxu0
  %460 = vdwg.mxu0
  %vm461 = vcmask 31744
  %v462 = vsel %vm461, %v33, 0.0
  %463 = vadd.xlane.f32.xlu0 %v462
  %v464 = vpop.xlane.xlu0 %463
  %v465 = vsel %vm461, %v34, 0.0
  %466 = vadd.xlane.f32.xlu0 %v465
  %v467 = vpop.xlane.xlu0 %466
  %v468 = vsel %vm461, %v35, 0.0
  %469 = vadd.xlane.f32.xlu0 %v468
  %v470 = vpop.xlane.xlu0 %469
  %v471 = vsel %vm461, %v36, 0.0
  %472 = vadd.xlane.f32.xlu0 %v471
  %v473 = vpop.xlane.xlu0 %472
  %v474 = vsel %vm461, %v37, 0.0
  %475 = vadd.xlane.f32.xlu0 %v474
  %v476 = vpop.xlane.xlu0 %475
  %v477 = vsel %vm461, %v38, 0.0
  %478 = vadd.xlane.f32.xlu0 %v477
  %v479 = vpop.xlane.xlu0 %478
  %v480 = vsel %vm461, %v39, 0.0
  %481 = vadd.xlane.f32.xlu0 %v480
  %v482 = vpop.xlane.xlu0 %481
  %v483 = vsel %vm461, %v40, 0.0
  %484 = vadd.xlane.f32.xlu0 %v483
  %v485 = vpop.xlane.xlu0 %484
  %v486 = vsel %vm461, %v41, 0.0
  %487 = vadd.xlane.f32.xlu0 %v486
  %v488 = vpop.xlane.xlu0 %487
  %v489 = vsel %vm461, %v42, 0.0
  %490 = vadd.xlane.f32.xlu0 %v489
  %v491 = vpop.xlane.xlu0 %490
  %v492 = vsel %vm461, %v43, 0.0
  %493 = vadd.xlane.f32.xlu0 %v492
  %v494 = vpop.xlane.xlu0 %493
  %v495 = vsel %vm461, %v44, 0.0
  %496 = vadd.xlane.f32.xlu0 %v495
  %v497 = vpop.xlane.xlu0 %496
  %v498 = vsel %vm461, %v45, 0.0
  %499 = vadd.xlane.f32.xlu0 %v498
  %v500 = vpop.xlane.xlu0 %499
  %v501 = vsel %vm461, %v46, 0.0
  %502 = vadd.xlane.f32.xlu0 %v501
  %v503 = vpop.xlane.xlu0 %502
  %v504 = vsel %vm461, %v47, 0.0
  %505 = vadd.xlane.f32.xlu0 %v504
  %v506 = vpop.xlane.xlu0 %505
  %v507 = vsel %vm461, %v48, 0.0
  %508 = vadd.xlane.f32.xlu0 %v507
  %v509 = vpop.xlane.xlu0 %508
  %v510 = vrcp.pop 4.0
  %v511 = vmul.f32 %v464, %v510
  %v512 = vmul.f32 %v467, %v510
  %v513 = vmul.f32 %v470, %v510
  %v514 = vmul.f32 %v473, %v510
  %v515 = vmul.f32 %v476, %v510
  %v516 = vmul.f32 %v479, %v510
  %v517 = vmul.f32 %v482, %v510
  %v518 = vmul.f32 %v485, %v510
  %v519 = vmul.f32 %v488, %v510
  %v520 = vmul.f32 %v491, %v510
  %v521 = vmul.f32 %v494, %v510
  %v522 = vmul.f32 %v497, %v510
  %v523 = vmul.f32 %v500, %v510
  %v524 = vmul.f32 %v503, %v510
  %v525 = vmul.f32 %v506, %v510
  %v526 = vmul.f32 %v509, %v510
  %v527 = vsub.f32 %v33, %v511
  %v528 = vsub.f32 %v34, %v512
  %v529 = vsub.f32 %v35, %v513
  %v530 = vsub.f32 %v36, %v514
  %v531 = vsub.f32 %v37, %v515
  %v532 = vsub.f32 %v38, %v516
  %v533 = vsub.f32 %v39, %v517
  %v534 = vsub.f32 %v40, %v518
  %v535 = vsub.f32 %v41, %v519
  %v536 = vsub.f32 %v42, %v520
  %v537 = vsub.f32 %v43, %v521
  %v538 = vsub.f32 %v44, %v522
  %v539 = vsub.f32 %v45, %v523
  %v540 = vsub.f32 %v46, %v524
  %v541 = vsub.f32 %v47, %v525
  %v542 = vsub.f32 %v48, %v526
  %v543 = vmul.f32 %v527, %v527
  %v544 = vmul.f32 %v528, %v528
  %v545 = vmul.f32 %v529, %v529
  %v546 = vmul.f32 %v530, %v530
  %v547 = vmul.f32 %v531, %v531
  %v548 = vmul.f32 %v532, %v532
  %v549 = vmul.f32 %v533, %v533
  %v550 = vmul.f32 %v534, %v534
  %v551 = vmul.f32 %v535, %v535
  %v552 = vmul.f32 %v536, %v536
  %v553 = vmul.f32 %v537, %v537
  %v554 = vmul.f32 %v538, %v538
  %v555 = vmul.f32 %v539, %v539
  %v556 = vmul.f32 %v540, %v540
  %v557 = vmul.f32 %v541, %v541
  %v558 = vmul.f32 %v542, %v542
  %v559 = vsel %vm461, %v543, 0.0
  %560 = vadd.xlane.f32.xlu0 %v559
  %v561 = vpop.xlane.xlu0 %560
  %v562 = vsel %vm461, %v544, 0.0
  %563 = vadd.xlane.f32.xlu0 %v562
  %v564 = vpop.xlane.xlu0 %563
  %v565 = vsel %vm461, %v545, 0.0
  %566 = vadd.xlane.f32.xlu0 %v565
  %v567 = vpop.xlane.xlu0 %566
  %v568 = vsel %vm461, %v546, 0.0
  %569 = vadd.xlane.f32.xlu0 %v568
  %v570 = vpop.xlane.xlu0 %569
  %v571 = vsel %vm461, %v547, 0.0
  %572 = vadd.xlane.f32.xlu0 %v571
  %v573 = vpop.xlane.xlu0 %572
  %v574 = vsel %vm461, %v548, 0.0
  %575 = vadd.xlane.f32.xlu0 %v574
  %v576 = vpop.xlane.xlu0 %575
  %v577 = vsel %vm461, %v549, 0.0
  %578 = vadd.xlane.f32.xlu0 %v577
  %v579 = vpop.xlane.xlu0 %578
  %v580 = vsel %vm461, %v550, 0.0
  %581 = vadd.xlane.f32.xlu0 %v580
  %v582 = vpop.xlane.xlu0 %581
  %v583 = vsel %vm461, %v551, 0.0
  %584 = vadd.xlane.f32.xlu0 %v583
  %v585 = vpop.xlane.xlu0 %584
  %v586 = vsel %vm461, %v552, 0.0
  %587 = vadd.xlane.f32.xlu0 %v586
  %v588 = vpop.xlane.xlu0 %587
  %v589 = vsel %vm461, %v553, 0.0
  %590 = vadd.xlane.f32.xlu0 %v589
  %v591 = vpop.xlane.xlu0 %590
  %v592 = vsel %vm461, %v554, 0.0
  %593 = vadd.xlane.f32.xlu0 %v592
  %v594 = vpop.xlane.xlu0 %593
  %v595 = vsel %vm461, %v555, 0.0
  %596 = vadd.xlane.f32.xlu0 %v595
  %v597 = vpop.xlane.xlu0 %596
  %v598 = vsel %vm461, %v556, 0.0
  %599 = vadd.xlane.f32.xlu0 %v598
  %v600 = vpop.xlane.xlu0 %599
  %v601 = vsel %vm461, %v557, 0.0
  %602 = vadd.xlane.f32.xlu0 %v601
  %v603 = vpop.xlane.xlu0 %602
  %v604 = vsel %vm461, %v558, 0.0
  %605 = vadd.xlane.f32.xlu0 %v604
  %v606 = vpop.xlane.xlu0 %605
  %v607 = vmul.f32 %v561, %v510
  %v608 = vmul.f32 %v564, %v510
  %v609 = vmul.f32 %v567, %v510
  %v610 = vmul.f32 %v570, %v510
  %v611 = vmul.f32 %v573, %v510
  %v612 = vmul.f32 %v576, %v510
  %v613 = vmul.f32 %v579, %v510
  %v614 = vmul.f32 %v582, %v510
  %v615 = vmul.f32 %v585, %v510
  %v616 = vmul.f32 %v588, %v510
  %v617 = vmul.f32 %v591, %v510
  %v618 = vmul.f32 %v594, %v510
  %v619 = vmul.f32 %v597, %v510
  %v620 = vmul.f32 %v600, %v510
  %v621 = vmul.f32 %v603, %v510
  %v622 = vmul.f32 %v606, %v510
  %v623 = vadd.f32 %v607, 1e-05
  %v624 = vadd.f32 %v608, 1e-05
  %v625 = vadd.f32 %v609, 1e-05
  %v626 = vadd.f32 %v610, 1e-05
  %v627 = vadd.f32 %v611, 1e-05
  %v628 = vadd.f32 %v612, 1e-05
  %v629 = vadd.f32 %v613, 1e-05
  %v630 = vadd.f32 %v614, 1e-05
  %v631 = vadd.f32 %v615, 1e-05
  %v632 = vadd.f32 %v616, 1e-05
  %v633 = vadd.f32 %v617, 1e-05
  %v634 = vadd.f32 %v618, 1e-05
  %v635 = vadd.f32 %v619, 1e-05
  %v636 = vadd.f32 %v620, 1e-05
  %v637 = vadd.f32 %v621, 1e-05
  %v638 = vadd.f32 %v622, 1e-05
  %v639 = vrsqrt.pop %v623
  %v640 = vrsqrt.pop %v624
  %v641 = vrsqrt.pop %v625
  %v642 = vrsqrt.pop %v626
  %v643 = vrsqrt.pop %v627
  %v644 = vrsqrt.pop %v628
  %v645 = vrsqrt.pop %v629
  %v646 = vrsqrt.pop %v630
  %v647 = vrsqrt.pop %v631
  %v648 = vrsqrt.pop %v632
  %v649 = vrsqrt.pop %v633
  %v650 = vrsqrt.pop %v634
  %v651 = vrsqrt.pop %v635
  %v652 = vrsqrt.pop %v636
  %v653 = vrsqrt.pop %v637
  %v654 = vrsqrt.pop %v638
  %v655 = vmul.f32 %v527, %v639
  %v656 = vmul.f32 %v528, %v640
  %v657 = vmul.f32 %v529, %v641
  %v658 = vmul.f32 %v530, %v642
  %v659 = vmul.f32 %v531, %v643
  %v660 = vmul.f32 %v532, %v644
  %v661 = vmul.f32 %v533, %v645
  %v662 = vmul.f32 %v534, %v646
  %v663 = vmul.f32 %v535, %v647
  %v664 = vmul.f32 %v536, %v648
  %v665 = vmul.f32 %v537, %v649
  %v666 = vmul.f32 %v538, %v650
  %v667 = vmul.f32 %v539, %v651
  %v668 = vmul.f32 %v540, %v652
  %v669 = vmul.f32 %v541, %v653
  %v670 = vmul.f32 %v542, %v654
  %v671 = vlaneseq
  %v672 = vshrl.u32 %v671, 7
  %v673 = vsub.s32 5, %v672
  %v674 = vrot.slane %v53, %v673
  %v676 = vsel %vm461, %v655, 0
  %v679 = vsel %vm461, %v656, 0
  %v682 = vsel %vm461, %v657, 0
  %v685 = vsel %vm461, %v658, 0
  %v688 = vsel %vm461, %v659, 0
  %v691 = vsel %vm461, %v660, 0
  %v694 = vsel %vm461, %v661, 0
  %v697 = vsel %vm461, %v662, 0
  %v700 = vsel %vm461, %v663, 0
  %v703 = vsel %vm461, %v664, 0
  %v706 = vsel %vm461, %v665, 0
  %v709 = vsel %vm461, %v666, 0
  %v712 = vsel %vm461, %v667, 0
  %v715 = vsel %vm461, %v668, 0
  %v718 = vsel %vm461, %v669, 0
  %v721 = vsel %vm461, %v670, 0
  %vm723 = vcmask 1043456
  %v725 = vsel %vm723, %v53, 0
  %727 = vmatprep.subr.mxu0 0.0
  %728 = vmatpush1.msra.mxu0 %v725
  %729 = vmatprep.subr.mxu0 0.0
  %730 = vmatpush1.msra.mxu0 0.0
  %731 = vmatprep.subr.mxu0 0.0
  %732 = vmatpush1.msra.mxu0 0.0
  %733 = vmatprep.subr.mxu0 0.0
  %734 = vmatpush1.msra.mxu0 0.0
  %735 = vmatprep.subr.mxu0 0.0
  %736 = vmatpush1.msra.mxu0 0.0
  %737 = vmatprep.subr.mxu0 0.0
  %738 = vmatpush1.msra.mxu0 0.0
  %739 = vmatprep.subr.mxu0 0.0
  %740 = vmatpush1.msra.mxu0 0.0
  %741 = vmatprep.subr.mxu0 0.0
  %742 = vmatpush1.msra.mxu0 0.0
  %743 = vmatprep.subr.mxu0 0.0
  %744 = vmatpush1.msra.mxu0 0.0
  %745 = vmatprep.subr.mxu0 0.0
  %746 = vmatpush1.msra.mxu0 0.0
  %747 = vmatprep.subr.mxu0 0.0
  %748 = vmatpush1.msra.mxu0 0.0
  %749 = vmatprep.subr.mxu0 0.0
  %750 = vmatpush1.msra.mxu0 0.0
  %751 = vmatprep.subr.mxu0 0.0
  %752 = vmatpush1.msra.mxu0 0.0
  %753 = vmatprep.subr.mxu0 0.0
  %754 = vmatpush1.msra.mxu0 0.0
  %755 = vmatprep.subr.mxu0 0.0
  %756 = vmatpush1.msra.mxu0 0.0
  %757 = vmatprep.subr.mxu0 0.0
  %758 = vmatpush1.msra.mxu0 0.0
  %759 = vmatprep.subr.mxu0 0.0
  %760 = vmatpush1.msra.mxu0 0.0
  %761 = vmatprep.subr.mxu0 0.0
  %762 = vmatpush1.msra.mxu0 0.0
  %763 = vmatprep.subr.mxu0 0.0
  %764 = vmatpush1.msra.mxu0 0.0
  %765 = vmatprep.subr.mxu0 0.0
  %766 = vmatpush1.msra.mxu0 0.0
  %767 = vmatprep.subr.mxu0 0.0
  %768 = vmatpush1.msra.mxu0 0.0
  %769 = vmatprep.subr.mxu0 0.0
  %770 = vmatpush1.msra.mxu0 0.0
  %771 = vmatprep.subr.mxu0 0.0
  %772 = vmatpush1.msra.mxu0 0.0
  %773 = vmatprep.subr.mxu0 0.0
  %774 = vmatpush1.msra.mxu0 0.0
  %775 = vmatprep.subr.mxu0 0.0
  %776 = vmatpush1.msra.mxu0 0.0
  %777 = vmatprep.subr.mxu0 0.0
  %778 = vmatpush1.msra.mxu0 0.0
  %779 = vmatprep.subr.mxu0 0.0
  %780 = vmatpush1.msra.mxu0 0.0
  %781 = vmatprep.subr.mxu0 0.0
  %782 = vmatpush1.msra.mxu0 0.0
  %783 = vmatprep.subr.mxu0 0.0
  %784 = vmatpush1.msra.mxu0 0.0
  %785 = vmatprep.subr.mxu0 0.0
  %786 = vmatpush1.msra.mxu0 0.0
  %787 = vmatprep.subr.mxu0 0.0
  %788 = vmatpush1.msra.mxu0 0.0
  %789 = vmatprep.subr.mxu0 0.0
  %790 = vmatpush1.msra.mxu0 0.0
  %791 = vmatprep.mubr.f32.mxu0 0.0
  %792 = vmatmul.mubr.f32.gmra.mrb[0].mxu0 %v676
  %v793 = vpop.f32.mrb[0].mxu0
  %v794 = vadd.f32 %v674, %v793
  %v795 = vpop.f32.mrb[0].mxu0
  %796 = vmatprep.mubr.f32.mxu0 0.0
  %797 = vmatmul.mubr.f32.gmra.mrb[0].mxu0 %v679
  %v798 = vpop.f32.mrb[0].mxu0
  %v799 = vadd.f32 %v674, %v798
  %v800 = vpop.f32.mrb[0].mxu0
  %801 = vmatprep.mubr.f32.mxu0 0.0
  %802 = vmatmul.mubr.f32.gmra.mrb[0].mxu0 %v682
  %v803 = vpop.f32.mrb[0].mxu0
  %v804 = vadd.f32 %v674, %v803
  %v805 = vpop.f32.mrb[0].mxu0
  %806 = vmatprep.mubr.f32.mxu0 0.0
  %807 = vmatmul.mubr.f32.gmra.mrb[0].mxu0 %v685
  %v808 = vpop.f32.mrb[0].mxu0
  %v809 = vadd.f32 %v674, %v808
  %v810 = vpop.f32.mrb[0].mxu0
  %811 = vmatprep.mubr.f32.mxu0 0.0
  %812 = vmatmul.mubr.f32.gmra.mrb[0].mxu0 %v688
  %v813 = vpop.f32.mrb[0].mxu0
  %v814 = vadd.f32 %v674, %v813
  %v815 = vpop.f32.mrb[0].mxu0
  %816 = vmatprep.mubr.f32.mxu0 0.0
  %817 = vmatmul.mubr.f32.gmra.mrb[0].mxu0 %v691
  %v818 = vpop.f32.mrb[0].mxu0
  %v819 = vadd.f32 %v674, %v818
  %v820 = vpop.f32.mrb[0].mxu0
  %821 = vmatprep.mubr.f32.mxu0 0.0
  %822 = vmatmul.mubr.f32.gmra.mrb[0].mxu0 %v694
  %v823 = vpop.f32.mrb[0].mxu0
  %v824 = vadd.f32 %v674, %v823
  %v825 = vpop.f32.mrb[0].mxu0
  %826 = vmatprep.mubr.f32.mxu0 0.0
  %827 = vmatmul.mubr.f32.gmra.mrb[0].mxu0 %v697
  %v828 = vpop.f32.mrb[0].mxu0
  %v829 = vadd.f32 %v674, %v828
  %v830 = vpop.f32.mrb[0].mxu0
  %831 = vmatprep.mubr.f32.mxu0 0.0
  %832 = vmatmul.mubr.f32.gmra.mrb[0].mxu0 %v700
  %v833 = vpop.f32.mrb[0].mxu0
  %v834 = vadd.f32 %v674, %v833
  %v835 = vpop.f32.mrb[0].mxu0
  %836 = vmatprep.mubr.f32.mxu0 0.0
  %837 = vmatmul.mubr.f32.gmra.mrb[0].mxu0 %v703
  %v838 = vpop.f32.mrb[0].mxu0
  %v839 = vadd.f32 %v674, %v838
  %v840 = vpop.f32.mrb[0].mxu0
  %841 = vmatprep.mubr.f32.mxu0 0.0
  %842 = vmatmul.mubr.f32.gmra.mrb[0].mxu0 %v706
  %v843 = vpop.f32.mrb[0].mxu0
  %v844 = vadd.f32 %v674, %v843
  %v845 = vpop.f32.mrb[0].mxu0
  %846 = vmatprep.mubr.f32.mxu0 0.0
  %847 = vmatmul.mubr.f32.gmra.mrb[0].mxu0 %v709
  %v848 = vpop.f32.mrb[0].mxu0
  %v849 = vadd.f32 %v674, %v848
  %v850 = vpop.f32.mrb[0].mxu0
  %851 = vmatprep.mubr.f32.mxu0 0.0
  %852 = vmatmul.mubr.f32.gmra.mrb[0].mxu0 %v712
  %v853 = vpop.f32.mrb[0].mxu0
  %v854 = vadd.f32 %v674, %v853
  %v855 = vpop.f32.mrb[0].mxu0
  %856 = vmatprep.mubr.f32.mxu0 0.0
  %857 = vmatmul.mubr.f32.gmra.mrb[0].mxu0 %v715
  %v858 = vpop.f32.mrb[0].mxu0
  %v859 = vadd.f32 %v674, %v858
  %v860 = vpop.f32.mrb[0].mxu0
  %861 = vmatprep.mubr.f32.mxu0 0.0
  %862 = vmatmul.mubr.f32.gmra.mrb[0].mxu0 %v718
  %v863 = vpop.f32.mrb[0].mxu0
  %v864 = vadd.f32 %v674, %v863
  %v865 = vpop.f32.mrb[0].mxu0
  %866 = vmatprep.mubr.f32.mxu0 0.0
  %867 = vmatmul.mubr.f32.gmra.mrb[0].mxu0 %v721
  %v868 = vpop.f32.mrb[0].mxu0
  %v869 = vadd.f32 %v674, %v868
  %v870 = vpop.f32.mrb[0].mxu0
  %871 = vdwg.mxu0
  %v872 = vld [vmem:[%s2] sm:$0xff]
  %v873 = vld [vmem:[%s2 + $0x8] sm:$0xff]
  %v874 = vld [vmem:[%s2 + $0x10] sm:$0xff]
  %v875 = vld [vmem:[%s2 + $0x18] sm:$0xff]
  %v876 = vld [vmem:[%s2 + $0x20] sm:$0xff]
  %v877 = vld [vmem:[%s2 + $0x28] sm:$0xff]
  %v878 = vld [vmem:[%s2 + $0x30] sm:$0xff]
  %v879 = vld [vmem:[%s2 + $0x38] sm:$0xff]
  %v880 = vld [vmem:[%s2 + $0x40] sm:$0xff]
  %v881 = vld [vmem:[%s2 + $0x48] sm:$0xff]
  %v882 = vld [vmem:[%s2 + $0x50] sm:$0xff]
  %v883 = vld [vmem:[%s2 + $0x58] sm:$0xff]
  %v884 = vld [vmem:[%s2 + $0x60] sm:$0xff]
  %v885 = vld [vmem:[%s2 + $0x68] sm:$0xff]
  %v886 = vld [vmem:[%s2 + $0x70] sm:$0xff]
  %v887 = vld [vmem:[%s2 + $0x78] sm:$0xff]
  %vm888 = vcmask 130048
  %v890 = vsel %vm888, %v383, 0
  %v893 = vsel %vm888, %v388, 0
  %v896 = vsel %vm888, %v393, 0
  %v899 = vsel %vm888, %v398, 0
  %v902 = vsel %vm888, %v403, 0
  %v905 = vsel %vm888, %v408, 0
  %v908 = vsel %vm888, %v413, 0
  %v911 = vsel %vm888, %v418, 0
  %v914 = vsel %vm888, %v423, 0
  %v917 = vsel %vm888, %v428, 0
  %v920 = vsel %vm888, %v433, 0
  %v923 = vsel %vm888, %v438, 0
  %v926 = vsel %vm888, %v443, 0
  %v929 = vsel %vm888, %v448, 0
  %v932 = vsel %vm888, %v453, 0
  %v935 = vsel %vm888, %v458, 0
  %v938 = vsel %vm888, %v794, 0
  %v941 = vsel %vm888, %v799, 0
  %v944 = vsel %vm888, %v804, 0
  %v947 = vsel %vm888, %v809, 0
  %v950 = vsel %vm888, %v814, 0
  %v953 = vsel %vm888, %v819, 0
  %v956 = vsel %vm888, %v824, 0
  %v959 = vsel %vm888, %v829, 0
  %v962 = vsel %vm888, %v834, 0
  %v965 = vsel %vm888, %v839, 0
  %v968 = vsel %vm888, %v844, 0
  %v971 = vsel %vm888, %v849, 0
  %v974 = vsel %vm888, %v854, 0
  %v977 = vsel %vm888, %v859, 0
  %v980 = vsel %vm888, %v864, 0
  %v983 = vsel %vm888, %v869, 0
  %985 = vmatprep.subr.mxu0 0.0
  %986 = vmatpush1.xpose.msra.mxu0 %v938
  %987 = vmatprep.subr.mxu0 0.0
  %988 = vmatpush1.xpose.msra.mxu0 %v941
  %989 = vmatprep.subr.mxu0 0.0
  %990 = vmatpush1.xpose.msra.mxu0 %v944
  %991 = vmatprep.subr.mxu0 0.0
  %992 = vmatpush1.xpose.msra.mxu0 %v947
  %993 = vmatprep.subr.mxu0 0.0
  %994 = vmatpush1.xpose.msra.mxu0 %v950
  %995 = vmatprep.subr.mxu0 0.0
  %996 = vmatpush1.xpose.msra.mxu0 %v953
  %997 = vmatprep.subr.mxu0 0.0
  %998 = vmatpush1.xpose.msra.mxu0 %v956
  %999 = vmatprep.subr.mxu0 0.0
  %1000 = vmatpush1.xpose.msra.mxu0 %v959
  %1001 = vmatprep.subr.mxu0 0.0
  %1002 = vmatpush1.xpose.msra.mxu0 %v962
  %1003 = vmatprep.subr.mxu0 0.0
  %1004 = vmatpush1.xpose.msra.mxu0 %v965
  %1005 = vmatprep.subr.mxu0 0.0
  %1006 = vmatpush1.xpose.msra.mxu0 %v968
  %1007 = vmatprep.subr.mxu0 0.0
  %1008 = vmatpush1.xpose.msra.mxu0 %v971
  %1009 = vmatprep.subr.mxu0 0.0
  %1010 = vmatpush1.xpose.msra.mxu0 %v974
  %1011 = vmatprep.subr.mxu0 0.0
  %1012 = vmatpush1.xpose.msra.mxu0 %v977
  %1013 = vmatprep.subr.mxu0 0.0
  %1014 = vmatpush1.xpose.msra.mxu0 %v980
  %1015 = vmatprep.subr.mxu0 0.0
  %1016 = vmatpush1.xpose.msra.mxu0 %v983
  %1017 = vmatprep.subr.mxu0 0.0
  %1018 = vmatpush1.xpose.msra.mxu0 0.0
  %1019 = vmatprep.subr.mxu0 0.0
  %1020 = vmatpush1.xpose.msra.mxu0 0.0
  %1021 = vmatprep.subr.mxu0 0.0
  %1022 = vmatpush1.xpose.msra.mxu0 0.0
  %1023 = vmatprep.subr.mxu0 0.0
  %1024 = vmatpush1.xpose.msra.mxu0 0.0
  %1025 = vmatprep.subr.mxu0 0.0
  %1026 = vmatpush1.xpose.msra.mxu0 0.0
  %1027 = vmatprep.subr.mxu0 0.0
  %1028 = vmatpush1.xpose.msra.mxu0 0.0
  %1029 = vmatprep.subr.mxu0 0.0
  %1030 = vmatpush1.xpose.msra.mxu0 0.0
  %1031 = vmatprep.subr.mxu0 0.0
  %1032 = vmatpush1.xpose.msra.mxu0 0.0
  %1033 = vmatprep.subr.mxu0 0.0
  %1034 = vmatpush1.xpose.msra.mxu0 0.0
  %1035 = vmatprep.subr.mxu0 0.0
  %1036 = vmatpush1.xpose.msra.mxu0 0.0
  %1037 = vmatprep.subr.mxu0 0.0
  %1038 = vmatpush1.xpose.msra.mxu0 0.0
  %1039 = vmatprep.subr.mxu0 0.0
  %1040 = vmatpush1.xpose.msra.mxu0 0.0
  %1041 = vmatprep.subr.mxu0 0.0
  %1042 = vmatpush1.xpose.msra.mxu0 0.0
  %1043 = vmatprep.subr.mxu0 0.0
  %1044 = vmatpush1.xpose.msra.mxu0 0.0
  %1045 = vmatprep.subr.mxu0 0.0
  %1046 = vmatpush1.xpose.msra.mxu0 0.0
  %1047 = vmatprep.subr.mxu0 0.0
  %1048 = vmatpush1.xpose.msra.mxu0 0.0
  %1049 = vmatprep.mubr.f32.mxu0 0.0
  %1050 = vmatmul.mubr.f32.gmra.mrb[0].mxu0 %v890
  %v1051 = vpop.f32.mrb[0].mxu0
  %v1052 = vadd.f32 %v872, %v1051
  %v1053 = vpop.f32.mrb[0].mxu0
  %1054 = vmatprep.mubr.f32.mxu0 0.0
  %1055 = vmatmul.mubr.f32.gmra.mrb[0].mxu0 %v893
  %v1056 = vpop.f32.mrb[0].mxu0
  %v1057 = vadd.f32 %v873, %v1056
  %v1058 = vpop.f32.mrb[0].mxu0
  %1059 = vmatprep.mubr.f32.mxu0 0.0
  %1060 = vmatmul.mubr.f32.gmra.mrb[0].mxu0 %v896
  %v1061 = vpop.f32.mrb[0].mxu0
  %v1062 = vadd.f32 %v874, %v1061
  %v1063 = vpop.f32.mrb[0].mxu0
  %1064 = vmatprep.mubr.f32.mxu0 0.0
  %1065 = vmatmul.mubr.f32.gmra.mrb[0].mxu0 %v899
  %v1066 = vpop.f32.mrb[0].mxu0
  %v1067 = vadd.f32 %v875, %v1066
  %v1068 = vpop.f32.mrb[0].mxu0
  %1069 = vmatprep.mubr.f32.mxu0 0.0
  %1070 = vmatmul.mubr.f32.gmra.mrb[0].mxu0 %v902
  %v1071 = vpop.f32.mrb[0].mxu0
  %v1072 = vadd.f32 %v876, %v1071
  %v1073 = vpop.f32.mrb[0].mxu0
  %1074 = vmatprep.mubr.f32.mxu0 0.0
  %1075 = vmatmul.mubr.f32.gmra.mrb[0].mxu0 %v905
  %v1076 = vpop.f32.mrb[0].mxu0
  %v1077 = vadd.f32 %v877, %v1076
  %v1078 = vpop.f32.mrb[0].mxu0
  %1079 = vmatprep.mubr.f32.mxu0 0.0
  %1080 = vmatmul.mubr.f32.gmra.mrb[0].mxu0 %v908
  %v1081 = vpop.f32.mrb[0].mxu0
  %v1082 = vadd.f32 %v878, %v1081
  %v1083 = vpop.f32.mrb[0].mxu0
  %1084 = vmatprep.mubr.f32.mxu0 0.0
  %1085 = vmatmul.mubr.f32.gmra.mrb[0].mxu0 %v911
  %v1086 = vpop.f32.mrb[0].mxu0
  %v1087 = vadd.f32 %v879, %v1086
  %v1088 = vpop.f32.mrb[0].mxu0
  %1089 = vmatprep.mubr.f32.mxu0 0.0
  %1090 = vmatmul.mubr.f32.gmra.mrb[0].mxu0 %v914
  %v1091 = vpop.f32.mrb[0].mxu0
  %v1092 = vadd.f32 %v880, %v1091
  %v1093 = vpop.f32.mrb[0].mxu0
  %1094 = vmatprep.mubr.f32.mxu0 0.0
  %1095 = vmatmul.mubr.f32.gmra.mrb[0].mxu0 %v917
  %v1096 = vpop.f32.mrb[0].mxu0
  %v1097 = vadd.f32 %v881, %v1096
  %v1098 = vpop.f32.mrb[0].mxu0
  %1099 = vmatprep.mubr.f32.mxu0 0.0
  %1100 = vmatmul.mubr.f32.gmra.mrb[0].mxu0 %v920
  %v1101 = vpop.f32.mrb[0].mxu0
  %v1102 = vadd.f32 %v882, %v1101
  %v1103 = vpop.f32.mrb[0].mxu0
  %1104 = vmatprep.mubr.f32.mxu0 0.0
  %1105 = vmatmul.mubr.f32.gmra.mrb[0].mxu0 %v923
  %v1106 = vpop.f32.mrb[0].mxu0
  %v1107 = vadd.f32 %v883, %v1106
  %v1108 = vpop.f32.mrb[0].mxu0
  %1109 = vmatprep.mubr.f32.mxu0 0.0
  %1110 = vmatmul.mubr.f32.gmra.mrb[0].mxu0 %v926
  %v1111 = vpop.f32.mrb[0].mxu0
  %v1112 = vadd.f32 %v884, %v1111
  %v1113 = vpop.f32.mrb[0].mxu0
  %1114 = vmatprep.mubr.f32.mxu0 0.0
  %1115 = vmatmul.mubr.f32.gmra.mrb[0].mxu0 %v929
  %v1116 = vpop.f32.mrb[0].mxu0
  %v1117 = vadd.f32 %v885, %v1116
  %v1118 = vpop.f32.mrb[0].mxu0
  %1119 = vmatprep.mubr.f32.mxu0 0.0
  %1120 = vmatmul.mubr.f32.gmra.mrb[0].mxu0 %v932
  %v1121 = vpop.f32.mrb[0].mxu0
  %v1122 = vadd.f32 %v886, %v1121
  %v1123 = vpop.f32.mrb[0].mxu0
  %1124 = vmatprep.mubr.f32.mxu0 0.0
  %1125 = vmatmul.mubr.f32.gmra.mrb[0].mxu0 %v935
  %v1126 = vpop.f32.mrb[0].mxu0
  %v1127 = vadd.f32 %v887, %v1126
  %v1128 = vpop.f32.mrb[0].mxu0
  %1129 = vdwg.mxu0
  %1130 = vmax.xlane.f32.xlu0 %v1052
  %v1131 = vpop.xlane.xlu0 %1130
  %1132 = vmax.xlane.f32.xlu0 %v1057
  %v1133 = vpop.xlane.xlu0 %1132
  %1134 = vmax.xlane.f32.xlu0 %v1062
  %v1135 = vpop.xlane.xlu0 %1134
  %1136 = vmax.xlane.f32.xlu0 %v1067
  %v1137 = vpop.xlane.xlu0 %1136
  %1138 = vmax.xlane.f32.xlu0 %v1072
  %v1139 = vpop.xlane.xlu0 %1138
  %1140 = vmax.xlane.f32.xlu0 %v1077
  %v1141 = vpop.xlane.xlu0 %1140
  %1142 = vmax.xlane.f32.xlu0 %v1082
  %v1143 = vpop.xlane.xlu0 %1142
  %1144 = vmax.xlane.f32.xlu0 %v1087
  %v1145 = vpop.xlane.xlu0 %1144
  %1146 = vmax.xlane.f32.xlu0 %v1092
  %v1147 = vpop.xlane.xlu0 %1146
  %1148 = vmax.xlane.f32.xlu0 %v1097
  %v1149 = vpop.xlane.xlu0 %1148
  %1150 = vmax.xlane.f32.xlu0 %v1102
  %v1151 = vpop.xlane.xlu0 %1150
  %1152 = vmax.xlane.f32.xlu0 %v1107
  %v1153 = vpop.xlane.xlu0 %1152
  %1154 = vmax.xlane.f32.xlu0 %v1112
  %v1155 = vpop.xlane.xlu0 %1154
  %1156 = vmax.xlane.f32.xlu0 %v1117
  %v1157 = vpop.xlane.xlu0 %1156
  %1158 = vmax.xlane.f32.xlu0 %v1122
  %v1159 = vpop.xlane.xlu0 %1158
  %1160 = vmax.xlane.f32.xlu0 %v1127
  %v1161 = vpop.xlane.xlu0 %1160
  %v1162 = vsub.f32 %v1052, %v1131
  %v1163 = vsub.f32 %v1057, %v1133
  %v1164 = vsub.f32 %v1062, %v1135
  %v1165 = vsub.f32 %v1067, %v1137
  %v1166 = vsub.f32 %v1072, %v1139
  %v1167 = vsub.f32 %v1077, %v1141
  %v1168 = vsub.f32 %v1082, %v1143
  %v1169 = vsub.f32 %v1087, %v1145
  %v1170 = vsub.f32 %v1092, %v1147
  %v1171 = vsub.f32 %v1097, %v1149
  %v1172 = vsub.f32 %v1102, %v1151
  %v1173 = vsub.f32 %v1107, %v1153
  %v1174 = vsub.f32 %v1112, %v1155
  %v1175 = vsub.f32 %v1117, %v1157
  %v1176 = vsub.f32 %v1122, %v1159
  %v1177 = vsub.f32 %v1127, %v1161
  %v1178 = vmul.f32 %v1162, 1.442695
  %v1179 = vpow.pop %v1178
  %v1180 = vmul.f32 %v1163, 1.442695
  %v1181 = vpow.pop %v1180
  %v1182 = vmul.f32 %v1164, 1.442695
  %v1183 = vpow.pop %v1182
  %v1184 = vmul.f32 %v1165, 1.442695
  %v1185 = vpow.pop %v1184
  %v1186 = vmul.f32 %v1166, 1.442695
  %v1187 = vpow.pop %v1186
  %v1188 = vmul.f32 %v1167, 1.442695
  %v1189 = vpow.pop %v1188
  %v1190 = vmul.f32 %v1168, 1.442695
  %v1191 = vpow.pop %v1190
  %v1192 = vmul.f32 %v1169, 1.442695
  %v1193 = vpow.pop %v1192
  %v1194 = vmul.f32 %v1170, 1.442695
  %v1195 = vpow.pop %v1194
  %v1196 = vmul.f32 %v1171, 1.442695
  %v1197 = vpow.pop %v1196
  %v1198 = vmul.f32 %v1172, 1.442695
  %v1199 = vpow.pop %v1198
  %v1200 = vmul.f32 %v1173, 1.442695
  %v1201 = vpow.pop %v1200
  %v1202 = vmul.f32 %v1174, 1.442695
  %v1203 = vpow.pop %v1202
  %v1204 = vmul.f32 %v1175, 1.442695
  %v1205 = vpow.pop %v1204
  %v1206 = vmul.f32 %v1176, 1.442695
  %v1207 = vpow.pop %v1206
  %v1208 = vmul.f32 %v1177, 1.442695
  %v1209 = vpow.pop %v1208
  %1210 = vmatprep.subr.mxu0 0.0
  %1211 = vmatpush1.msra.mxu0 %v33
  %1212 = vmatprep.subr.mxu0 0.0
  %1213 = vmatpush1.msra.mxu0 %v34
  %1214 = vmatprep.subr.mxu0 0.0
  %1215 = vmatpush1.msra.mxu0 %v35
  %1216 = vmatprep.subr.mxu0 0.0
  %1217 = vmatpush1.msra.mxu0 %v36
  %1218 = vmatprep.subr.mxu0 0.0
  %1219 = vmatpush1.msra.mxu0 %v37
  %1220 = vmatprep.subr.mxu0 0.0
  %1221 = vmatpush1.msra.mxu0 %v38
  %1222 = vmatprep.subr.mxu0 0.0
  %1223 = vmatpush1.msra.mxu0 %v39
  %1224 = vmatprep.subr.mxu0 0.0
  %1225 = vmatpush1.msra.mxu0 %v40
  %1226 = vmatprep.subr.mxu0 0.0
  %1227 = vmatpush1.msra.mxu0 %v41
  %1228 = vmatprep.subr.mxu0 0.0
  %1229 = vmatpush1.msra.mxu0 %v42
  %1230 = vmatprep.subr.mxu0 0.0
  %1231 = vmatpush1.msra.mxu0 %v43
  %1232 = vmatprep.subr.mxu0 0.0
  %1233 = vmatpush1.msra.mxu0 %v44
  %1234 = vmatprep.subr.mxu0 0.0
  %1235 = vmatpush1.msra.mxu0 %v45
  %1236 = vmatprep.subr.mxu0 0.0
  %1237 = vmatpush1.msra.mxu0 %v46
  %1238 = vmatprep.subr.mxu0 0.0
  %1239 = vmatpush1.msra.mxu0 %v47
  %1240 = vmatprep.subr.mxu0 0.0
  %1241 = vmatpush1.msra.mxu0 %v48
  %1242 = vmatprep.subr.mxu0 0.0
  %1243 = vmatpush1.msra.mxu0 0.0
  %1244 = vmatprep.subr.mxu0 0.0
  %1245 = vmatpush1.msra.mxu0 0.0
  %1246 = vmatprep.subr.mxu0 0.0
  %1247 = vmatpush1.msra.mxu0 0.0
  %1248 = vmatprep.subr.mxu0 0.0
  %1249 = vmatpush1.msra.mxu0 0.0
  %1250 = vmatprep.subr.mxu0 0.0
  %1251 = vmatpush1.msra.mxu0 0.0
  %1252 = vmatprep.subr.mxu0 0.0
  %1253 = vmatpush1.msra.mxu0 0.0
  %1254 = vmatprep.subr.mxu0 0.0
  %1255 = vmatpush1.msra.mxu0 0.0
  %1256 = vmatprep.subr.mxu0 0.0
  %1257 = vmatpush1.msra.mxu0 0.0
  %1258 = vmatprep.subr.mxu0 0.0
  %1259 = vmatpush1.msra.mxu0 0.0
  %1260 = vmatprep.subr.mxu0 0.0
  %1261 = vmatpush1.msra.mxu0 0.0
  %1262 = vmatprep.subr.mxu0 0.0
  %1263 = vmatpush1.msra.mxu0 0.0
  %1264 = vmatprep.subr.mxu0 0.0
  %1265 = vmatpush1.msra.mxu0 0.0
  %1266 = vmatprep.subr.mxu0 0.0
  %1267 = vmatpush1.msra.mxu0 0.0
  %1268 = vmatprep.subr.mxu0 0.0
  %1269 = vmatpush1.msra.mxu0 0.0
  %1270 = vmatprep.subr.mxu0 0.0
  %1271 = vmatpush1.msra.mxu0 0.0
  %1272 = vmatprep.subr.mxu0 0.0
  %1273 = vmatpush1.msra.mxu0 0.0
  %1274 = vmatprep.mubr.f32.mxu0 0.0
  %1275 = vmatmul.mubr.f32.gmra.mrb[0].mxu0 %v1179
  %v1276 = vpop.f32.mrb[0].mxu0
  %v1277 = vadd.f32 0.0, %v1276
  %v1278 = vpop.f32.mrb[0].mxu0
  %1279 = vmatprep.mubr.f32.mxu0 0.0
  %1280 = vmatmul.mubr.f32.gmra.mrb[0].mxu0 %v1181
  %v1281 = vpop.f32.mrb[0].mxu0
  %v1282 = vadd.f32 0.0, %v1281
  %v1283 = vpop.f32.mrb[0].mxu0
  %1284 = vmatprep.mubr.f32.mxu0 0.0
  %1285 = vmatmul.mubr.f32.gmra.mrb[0].mxu0 %v1183
  %v1286 = vpop.f32.mrb[0].mxu0
  %v1287 = vadd.f32 0.0, %v1286
  %v1288 = vpop.f32.mrb[0].mxu0
  %1289 = vmatprep.mubr.f32.mxu0 0.0
  %1290 = vmatmul.mubr.f32.gmra.mrb[0].mxu0 %v1185
  %v1291 = vpop.f32.mrb[0].mxu0
  %v1292 = vadd.f32 0.0, %v1291
  %v1293 = vpop.f32.mrb[0].mxu0
  %1294 = vmatprep.mubr.f32.mxu0 0.0
  %1295 = vmatmul.mubr.f32.gmra.mrb[0].mxu0 %v1187
  %v1296 = vpop.f32.mrb[0].mxu0
  %v1297 = vadd.f32 0.0, %v1296
  %v1298 = vpop.f32.mrb[0].mxu0
  %1299 = vmatprep.mubr.f32.mxu0 0.0
  %1300 = vmatmul.mubr.f32.gmra.mrb[0].mxu0 %v1189
  %v1301 = vpop.f32.mrb[0].mxu0
  %v1302 = vadd.f32 0.0, %v1301
  %v1303 = vpop.f32.mrb[0].mxu0
  %1304 = vmatprep.mubr.f32.mxu0 0.0
  %1305 = vmatmul.mubr.f32.gmra.mrb[0].mxu0 %v1191
  %v1306 = vpop.f32.mrb[0].mxu0
  %v1307 = vadd.f32 0.0, %v1306
  %v1308 = vpop.f32.mrb[0].mxu0
  %1309 = vmatprep.mubr.f32.mxu0 0.0
  %1310 = vmatmul.mubr.f32.gmra.mrb[0].mxu0 %v1193
  %v1311 = vpop.f32.mrb[0].mxu0
  %v1312 = vadd.f32 0.0, %v1311
  %v1313 = vpop.f32.mrb[0].mxu0
  %1314 = vmatprep.mubr.f32.mxu0 0.0
  %1315 = vmatmul.mubr.f32.gmra.mrb[0].mxu0 %v1195
  %v1316 = vpop.f32.mrb[0].mxu0
  %v1317 = vadd.f32 0.0, %v1316
  %v1318 = vpop.f32.mrb[0].mxu0
  %1319 = vmatprep.mubr.f32.mxu0 0.0
  %1320 = vmatmul.mubr.f32.gmra.mrb[0].mxu0 %v1197
  %v1321 = vpop.f32.mrb[0].mxu0
  %v1322 = vadd.f32 0.0, %v1321
  %v1323 = vpop.f32.mrb[0].mxu0
  %1324 = vmatprep.mubr.f32.mxu0 0.0
  %1325 = vmatmul.mubr.f32.gmra.mrb[0].mxu0 %v1199
  %v1326 = vpop.f32.mrb[0].mxu0
  %v1327 = vadd.f32 0.0, %v1326
  %v1328 = vpop.f32.mrb[0].mxu0
  %1329 = vmatprep.mubr.f32.mxu0 0.0
  %1330 = vmatmul.mubr.f32.gmra.mrb[0].mxu0 %v1201
  %v1331 = vpop.f32.mrb[0].mxu0
  %v1332 = vadd.f32 0.0, %v1331
  %v1333 = vpop.f32.mrb[0].mxu0
  %1334 = vmatprep.mubr.f32.mxu0 0.0
  %1335 = vmatmul.mubr.f32.gmra.mrb[0].mxu0 %v1203
  %v1336 = vpop.f32.mrb[0].mxu0
  %v1337 = vadd.f32 0.0, %v1336
  %v1338 = vpop.f32.mrb[0].mxu0
  %1339 = vmatprep.mubr.f32.mxu0 0.0
  %1340 = vmatmul.mubr.f32.gmra.mrb[0].mxu0 %v1205
  %v1341 = vpop.f32.mrb[0].mxu0
  %v1342 = vadd.f32 0.0, %v1341
  %v1343 = vpop.f32.mrb[0].mxu0
  %1344 = vmatprep.mubr.f32.mxu0 0.0
  %1345 = vmatmul.mubr.f32.gmra.mrb[0].mxu0 %v1207
  %v1346 = vpop.f32.mrb[0].mxu0
  %v1347 = vadd.f32 0.0, %v1346
  %v1348 = vpop.f32.mrb[0].mxu0
  %1349 = vmatprep.mubr.f32.mxu0 0.0
  %1350 = vmatmul.mubr.f32.gmra.mrb[0].mxu0 %v1209
  %v1351 = vpop.f32.mrb[0].mxu0
  %v1352 = vadd.f32 0.0, %v1351
  %v1353 = vpop.f32.mrb[0].mxu0
  %1354 = vdwg.mxu0
  %v1355 = vrcp.pop %v1277
  %v1356 = vrcp.pop %v1282
  %v1357 = vrcp.pop %v1287
  %v1358 = vrcp.pop %v1292
  %v1359 = vrcp.pop %v1297
  %v1360 = vrcp.pop %v1302
  %v1361 = vrcp.pop %v1307
  %v1362 = vrcp.pop %v1312
  %v1363 = vrcp.pop %v1317
  %v1364 = vrcp.pop %v1322
  %v1365 = vrcp.pop %v1327
  %v1366 = vrcp.pop %v1332
  %v1367 = vrcp.pop %v1337
  %v1368 = vrcp.pop %v1342
  %v1369 = vrcp.pop %v1347
  %v1370 = vrcp.pop %v1352
  %v1371 = vmul.f32 %v1277, %v1355
  %v1372 = vmul.f32 %v1282, %v1356
  %v1373 = vmul.f32 %v1287, %v1357
  %v1374 = vmul.f32 %v1292, %v1358
  %v1375 = vmul.f32 %v1297, %v1359
  %v1376 = vmul.f32 %v1302, %v1360
  %v1377 = vmul.f32 %v1307, %v1361
  %v1378 = vmul.f32 %v1312, %v1362
  %v1379 = vmul.f32 %v1317, %v1363
  %v1380 = vmul.f32 %v1322, %v1364
  %v1381 = vmul.f32 %v1327, %v1365
  %v1382 = vmul.f32 %v1332, %v1366
  %v1383 = vmul.f32 %v1337, %v1367
  %v1384 = vmul.f32 %v1342, %v1368
  %v1385 = vmul.f32 %v1347, %v1369
  %v1386 = vmul.f32 %v1352, %v1370
  %v1387 = vsub.f32 2.0, %v1371
  %v1388 = vsub.f32 2.0, %v1372
  %v1389 = vsub.f32 2.0, %v1373
  %v1390 = vsub.f32 2.0, %v1374
  %v1391 = vsub.f32 2.0, %v1375
  %v1392 = vsub.f32 2.0, %v1376
  %v1393 = vsub.f32 2.0, %v1377
  %v1394 = vsub.f32 2.0, %v1378
  %v1395 = vsub.f32 2.0, %v1379
  %v1396 = vsub.f32 2.0, %v1380
  %v1397 = vsub.f32 2.0, %v1381
  %v1398 = vsub.f32 2.0, %v1382
  %v1399 = vsub.f32 2.0, %v1383
  %v1400 = vsub.f32 2.0, %v1384
  %v1401 = vsub.f32 2.0, %v1385
  %v1402 = vsub.f32 2.0, %v1386
  %v1403 = vmul.f32 %v1355, %v1387
  %v1404 = vmul.f32 %v1356, %v1388
  %v1405 = vmul.f32 %v1357, %v1389
  %v1406 = vmul.f32 %v1358, %v1390
  %v1407 = vmul.f32 %v1359, %v1391
  %v1408 = vmul.f32 %v1360, %v1392
  %v1409 = vmul.f32 %v1361, %v1393
  %v1410 = vmul.f32 %v1362, %v1394
  %v1411 = vmul.f32 %v1363, %v1395
  %v1412 = vmul.f32 %v1364, %v1396
  %v1413 = vmul.f32 %v1365, %v1397
  %v1414 = vmul.f32 %v1366, %v1398
  %v1415 = vmul.f32 %v1367, %v1399
  %v1416 = vmul.f32 %v1368, %v1400
  %v1417 = vmul.f32 %v1369, %v1401
  %v1418 = vmul.f32 %v1370, %v1402
  %1420 = vset.pattern.permute.xlu0 4
  %1421 = vperm.xlu0 %1420, %v1403
  %v1422 = vpop.permute.xlu0 %1421
  %1425 = vset.pattern.permute.xlu0 4
  %1426 = vperm.xlu0 %1425, %v1404
  %v1427 = vpop.permute.xlu0 %1426
  %1430 = vset.pattern.permute.xlu0 4
  %1431 = vperm.xlu0 %1430, %v1405
  %v1432 = vpop.permute.xlu0 %1431
  %1435 = vset.pattern.permute.xlu0 4
  %1436 = vperm.xlu0 %1435, %v1406
  %v1437 = vpop.permute.xlu0 %1436
  %1440 = vset.pattern.permute.xlu0 4
  %1441 = vperm.xlu0 %1440, %v1407
  %v1442 = vpop.permute.xlu0 %1441
  %1445 = vset.pattern.permute.xlu0 4
  %1446 = vperm.xlu0 %1445, %v1408
  %v1447 = vpop.permute.xlu0 %1446
  %1450 = vset.pattern.permute.xlu0 4
  %1451 = vperm.xlu0 %1450, %v1409
  %v1452 = vpop.permute.xlu0 %1451
  %1455 = vset.pattern.permute.xlu0 4
  %1456 = vperm.xlu0 %1455, %v1410
  %v1457 = vpop.permute.xlu0 %1456
  %1460 = vset.pattern.permute.xlu0 4
  %1461 = vperm.xlu0 %1460, %v1411
  %v1462 = vpop.permute.xlu0 %1461
  %1465 = vset.pattern.permute.xlu0 4
  %1466 = vperm.xlu0 %1465, %v1412
  %v1467 = vpop.permute.xlu0 %1466
  %1470 = vset.pattern.permute.xlu0 4
  %1471 = vperm.xlu0 %1470, %v1413
  %v1472 = vpop.permute.xlu0 %1471
  %1475 = vset.pattern.permute.xlu0 4
  %1476 = vperm.xlu0 %1475, %v1414
  %v1477 = vpop.permute.xlu0 %1476
  %1480 = vset.pattern.permute.xlu0 4
  %1481 = vperm.xlu0 %1480, %v1415
  %v1482 = vpop.permute.xlu0 %1481
  %1485 = vset.pattern.permute.xlu0 4
  %1486 = vperm.xlu0 %1485, %v1416
  %v1487 = vpop.permute.xlu0 %1486
  %1490 = vset.pattern.permute.xlu0 4
  %1491 = vperm.xlu0 %1490, %v1417
  %v1492 = vpop.permute.xlu0 %1491
  %1495 = vset.pattern.permute.xlu0 4
  %1496 = vperm.xlu0 %1495, %v1418
  %v1497 = vpop.permute.xlu0 %1496
  %v1499 = vmul.f32 %v1277, %v1422
  %v1500 = vmul.f32 %v1282, %v1427
  %v1501 = vmul.f32 %v1287, %v1432
  %v1502 = vmul.f32 %v1292, %v1437
  %v1503 = vmul.f32 %v1297, %v1442
  %v1504 = vmul.f32 %v1302, %v1447
  %v1505 = vmul.f32 %v1307, %v1452
  %v1506 = vmul.f32 %v1312, %v1457
  %v1507 = vmul.f32 %v1317, %v1462
  %v1508 = vmul.f32 %v1322, %v1467
  %v1509 = vmul.f32 %v1327, %v1472
  %v1510 = vmul.f32 %v1332, %v1477
  %v1511 = vmul.f32 %v1337, %v1482
  %v1512 = vmul.f32 %v1342, %v1487
  %v1513 = vmul.f32 %v1347, %v1492
  %v1514 = vmul.f32 %v1352, %v1497
  %1515 = vst.msk [vmem:[%s4] sm:$0xff] %vm461, %v1499
  %1516 = vst.msk [vmem:[%s4 + $0x8] sm:$0xff] %vm461, %v1500
  %1517 = vst.msk [vmem:[%s4 + $0x10] sm:$0xff] %vm461, %v1501
  %1518 = vst.msk [vmem:[%s4 + $0x18] sm:$0xff] %vm461, %v1502
  %1519 = vst.msk [vmem:[%s4 + $0x20] sm:$0xff] %vm461, %v1503
  %1520 = vst.msk [vmem:[%s4 + $0x28] sm:$0xff] %vm461, %v1504
  %1521 = vst.msk [vmem:[%s4 + $0x30] sm:$0xff] %vm461, %v1505
  %1522 = vst.msk [vmem:[%s4 + $0x38] sm:$0xff] %vm461, %v1506
  %1523 = vst.msk [vmem:[%s4 + $0x40] sm:$0xff] %vm461, %v1507
  %1524 = vst.msk [vmem:[%s4 + $0x48] sm:$0xff] %vm461, %v1508
  %1525 = vst.msk [vmem:[%s4 + $0x50] sm:$0xff] %vm461, %v1509
  %1526 = vst.msk [vmem:[%s4 + $0x58] sm:$0xff] %vm461, %v1510
  %1527 = vst.msk [vmem:[%s4 + $0x60] sm:$0xff] %vm461, %v1511
  %1528 = vst.msk [vmem:[%s4 + $0x68] sm:$0xff] %vm461, %v1512
  %1529 = vst.msk [vmem:[%s4 + $0x70] sm:$0xff] %vm461, %v1513
  %1530 = vst.msk [vmem:[%s4 + $0x78] sm:$0xff] %vm461, %v1514
  // Predicated region
  $region18: #{sapa_forward.1} parent=0 // pred_check
    _
  $region19: #{sapa_forward.1} parent=0 // pred_check_branch
    %1532 = sbr.rel (0) target = $region21
  $region20: #{sapa_forward.1} parent=0 // pred_region
    _
  $region21: #{sapa_forward.1} parent=0 // pred_fallthru
    _
  // Predicated region
  $region22: #{sapa_forward.1} parent=0 // pred_check
    _
  $region23: #{sapa_forward.1} parent=0 // pred_check_branch
    %1534 = sbr.rel (0) target = $region25
  $region24: #{sapa_forward.1} parent=0 // pred_region
    _
  $region25: #{sapa_forward.1} parent=0 // pred_fallthru
    _

</llo_original>
